<compile_context>
chip_gen: v5e
topology: v5e:2x2
jax: 0.10.0
libtpu: 0.0.40
codegen_flags: <defaults>
</compile_context>

<pallas_src>
import functools

import numpy as np
import jax
import jax.numpy as jnp
from jax import lax
from jax.experimental import pallas as pl
from jax.experimental.pallas import tpu as pltpu

VMEM_SPEC = pl.BlockSpec(memory_space=pltpu.MemorySpace.VMEM)
MAX_UNROLL = 8            # bounded unroll for the per-chunk recurrent loop
CHUNK_T = 8               # timesteps per streamed x / gate chunk


@functools.lru_cache(maxsize=1)
def _vmem_budget_bytes():
    """Per-generation scoped-VMEM budget (~75% of physical, clamped)."""
    try:
        cap = int(pltpu.get_tpu_info().vmem_capacity_bytes)
    except Exception:
        cap = 64 * 1024 * 1024
    return int(min(max(cap * 3 // 4, 32 * 1024 * 1024), 100 * 1024 * 1024))


@functools.lru_cache(maxsize=1)
def _num_tensorcores():
    # TODO(synk): pin down the exact TpuInfo field for TensorCores-per-chip on
    # v7x; until then fall back to 1 (no batch sharding) which is always safe.
    try:
        info = pltpu.get_tpu_info()
        for name in ("num_cores", "core_count", "num_tensorcores",
                     "tensorcore_count"):
            v = getattr(info, name, None)
            if isinstance(v, int) and v > 0:
                return v
    except Exception:
        pass
    return 1


def _shard_plan(batch):
    """(num_batch_shards, padded_batch).  Shard only when >1 TC is available
    and each shard still fills >=16 MXU rows (otherwise sharding just halves
    per-step MXU row utilization on a single-TC chip)."""
    num_shards = 2 if (_num_tensorcores() >= 2 and batch >= 32) else 1
    unit = 8 * num_shards
    bp = ((max(batch, 16) + unit - 1) // unit) * unit
    return num_shards, bp


# ----------------------------- Pallas kernels -----------------------------

def _compute_chunk_gates(x_ref, wih_ref, gx_ref):
    """One (CT*Bs, E) @ (E, 4H) MXU matmul for the whole chunk; cached bf16."""
    CT, Bs, E = x_ref.shape
    gx = jnp.dot(x_ref[...].reshape(CT * Bs, E), wih_ref[...],
                 preferred_element_type=jnp.float32)
    gx_ref[...] = gx.astype(jnp.bfloat16).reshape(CT, Bs, gx.shape[-1])


def _lstm_chunk_steps(c_idx, gx_ref, whh, bias, lens, h_sc, c_sc, emit_fn=None):
    """Run CHUNK_T recurrence steps; (h, c) carried as fori-loop values and
    persisted across chunks via the (Bs, H) scratch refs."""
    CT = gx_ref.shape[0]
    H = whh.shape[0]

    def step(tl, carry):
        h, cell = carry
        gates = (gx_ref[tl].astype(jnp.float32) + bias
                 + jnp.dot(h.astype(jnp.bfloat16), whh,
                           preferred_element_type=jnp.float32))
        # NOTE: gate slices are lane-misaligned at toy H=32; at production
        # sizes (H a multiple of 128) these become free, aligned vreg views.
        # TODO(synk): compute sigmoid/tanh in bf16 on v6e/v7x (f32 kept for
        # v5e which has no bf16 VPU/EUP).
        i = jax.nn.sigmoid(gates[:, 0:H])
        f = jax.nn.sigmoid(gates[:, H:2 * H])
        g = jnp.tanh(gates[:, 2 * H:3 * H])
        o = jax.nn.sigmoid(gates[:, 3 * H:4 * H])
        c_new = f * cell + i * g
        h_new = o * jnp.tanh(c_new)
        valid = (c_idx * CT + tl) < lens          # (Bs, 1) packed-seq mask
        if emit_fn is not None:
            emit_fn(tl, jnp.where(valid, h_new, 0.0))
        return jnp.where(valid, h_new, h), jnp.where(valid, c_new, cell)

    h, cell = lax.fori_loop(0, CT, step, (h_sc[...], c_sc[...]),
                            unroll=min(CT, MAX_UNROLL))
    h_sc[...] = h
    c_sc[...] = cell
    return h, cell


def _lstm_enc_kernel(x_ref, len_ref, wih_ref, whh_ref, b_ref, wout_ref,
                     bout_ref, muvar_ref, h_sc, c_sc, gx_ref):
    """Packed-sequence LSTM, time streamed in chunks; fused epilogue:
    cat(h, c) @ W_out + b_out."""
    H = whh_ref.shape[0]
    c_idx = pl.program_id(1)

    @pl.when(c_idx == 0)
    def _():
        h_sc[...] = jnp.zeros_like(h_sc)
        c_sc[...] = jnp.zeros_like(c_sc)

    _compute_chunk_gates(x_ref, wih_ref, gx_ref)
    h, cell = _lstm_chunk_steps(c_idx, gx_ref, whh_ref[...], b_ref[...],
                                len_ref[...], h_sc, c_sc)

    @pl.when(c_idx == pl.num_programs(1) - 1)
    def _():
        # cat([h, c]) @ W_out + b_out as two row-split matmuls (no lane concat)
        muvar_ref[...] = (
            jnp.dot(h.astype(jnp.bfloat16), wout_ref[0:H, :],
                    preferred_element_type=jnp.float32)
            + jnp.dot(cell.astype(jnp.bfloat16), wout_ref[H:2 * H, :],
                      preferred_element_type=jnp.float32)
            + bout_ref[...])


def _lstm_dec_kernel(x_ref, len_ref, z_ref, wih_ref, whh_ref, b_ref,
                     winit_ref, binit_ref, out_ref, h_sc, c_sc, gx_ref):
    """Packed-sequence LSTM with fused (init_h | init_c) prologue; emits
    zero-padded per-step bf16 outputs (pad_packed_sequence semantics)."""
    H = whh_ref.shape[0]
    c_idx = pl.program_id(1)

    @pl.when(c_idx == 0)
    def _():
        # Fused init_h / init_c: single (z, 2H) matmul.
        h0c0 = (jnp.dot(z_ref[...], winit_ref[...],
                        preferred_element_type=jnp.float32) + binit_ref[...])
        h_sc[...] = h0c0[:, 0:H]
        c_sc[...] = h0c0[:, H:2 * H]

    _compute_chunk_gates(x_ref, wih_ref, gx_ref)

    def emit(tl, h_masked):
        # TODO(synk): for H < 128 these per-step stores are masked partial
        # stores; production H (multiple of 128) makes them lane-dense.
        out_ref[tl] = h_masked.astype(out_ref.dtype)

    _lstm_chunk_steps(c_idx, gx_ref, whh_ref[...], b_ref[...], len_ref[...],
                      h_sc, c_sc, emit_fn=emit)


def _proj_logsoftmax_kernel(x_ref, w_ref, b_ref, o_ref):
    logit = (jnp.dot(x_ref[...], w_ref[...],
                     preferred_element_type=jnp.float32) + b_ref[...])
    m = jnp.max(logit, axis=-1, keepdims=True)
    lse = m + jnp.log(jnp.sum(jnp.exp(logit - m), axis=-1, keepdims=True))
    o_ref[...] = logit - lse


# ----------------------------- wrappers -----------------------------------

def lstm_encoder_mu_logvar(x_tbe, lens_b1, w_ih, w_hh, b, w_out, b_out,
                           chunk_t=CHUNK_T):
    """Encoder: packed LSTM over (T, B, E), fused final projection -> (B, 2Z)."""
    T, B, E = x_tbe.shape
    H = w_hh.shape[0]
    Z2 = w_out.shape[1]
    num_shards, Bp = _shard_plan(B)
    Bs = Bp // num_shards
    Tp = pl.cdiv(T, chunk_t) * chunk_t
    x_p = jnp.pad(x_tbe.astype(jnp.bfloat16),
                  ((0, Tp - T), (0, Bp - B), (0, 0)))
    lens_p = jnp.pad(lens_b1.astype(jnp.int32), ((0, Bp - B), (0, 0)))
    muvar = pl.pallas_call(
        _lstm_enc_kernel,
        out_shape=jax.ShapeDtypeStruct((Bp, Z2), jnp.float32),
        grid=(num_shards, Tp // chunk_t),
        in_specs=[
            pl.BlockSpec((chunk_t, Bs, E), lambda s, c: (c, s, 0)),  # x chunks
            pl.BlockSpec((Bs, 1), lambda s, c: (s, 0)),              # lengths
            VMEM_SPEC, VMEM_SPEC, VMEM_SPEC,                         # w_ih, w_hh, b
            VMEM_SPEC, VMEM_SPEC,                                    # w_out, b_out
        ],
        out_specs=pl.BlockSpec((Bs, Z2), lambda s, c: (s, 0)),
        scratch_shapes=[
            pltpu.VMEM((Bs, H), jnp.float32),                 # h carry
            pltpu.VMEM((Bs, H), jnp.float32),                 # c carry
            pltpu.VMEM((chunk_t, Bs, 4 * H), jnp.bfloat16),   # chunk gates
        ],
        compiler_params=pltpu.CompilerParams(
            dimension_semantics=("parallel", "arbitrary"),
            vmem_limit_bytes=_vmem_budget_bytes()),
    )(x_p, lens_p, w_ih.astype(jnp.bfloat16), w_hh.astype(jnp.bfloat16),
      b, w_out.astype(jnp.bfloat16), b_out)
    return muvar[:B]


def lstm_decoder_outputs(x_tbe, lens_b1, z, w_ih, w_hh, b, w_init, b_init,
                         chunk_t=CHUNK_T):
    """Decoder: fused (init_h|init_c) + packed LSTM -> (T, B, H) bf16 outputs."""
    T, B, E = x_tbe.shape
    H = w_hh.shape[0]
    Zd = z.shape[1]
    num_shards, Bp = _shard_plan(B)
    Bs = Bp // num_shards
    Tp = pl.cdiv(T, chunk_t) * chunk_t
    x_p = jnp.pad(x_tbe.astype(jnp.bfloat16),
                  ((0, Tp - T), (0, Bp - B), (0, 0)))
    lens_p = jnp.pad(lens_b1.astype(jnp.int32), ((0, Bp - B), (0, 0)))
    z_p = jnp.pad(z.astype(jnp.bfloat16), ((0, Bp - B), (0, 0)))
    out = pl.pallas_call(
        _lstm_dec_kernel,
        out_shape=jax.ShapeDtypeStruct((Tp, Bp, H), jnp.bfloat16),
        grid=(num_shards, Tp // chunk_t),
        in_specs=[
            pl.BlockSpec((chunk_t, Bs, E), lambda s, c: (c, s, 0)),  # x chunks
            pl.BlockSpec((Bs, 1), lambda s, c: (s, 0)),              # lengths
            pl.BlockSpec((Bs, Zd), lambda s, c: (s, 0)),             # z
            VMEM_SPEC, VMEM_SPEC, VMEM_SPEC,                         # w_ih, w_hh, b
            VMEM_SPEC, VMEM_SPEC,                                    # w_init, b_init
        ],
        out_specs=pl.BlockSpec((chunk_t, Bs, H), lambda s, c: (c, s, 0)),
        scratch_shapes=[
            pltpu.VMEM((Bs, H), jnp.float32),
            pltpu.VMEM((Bs, H), jnp.float32),
            pltpu.VMEM((chunk_t, Bs, 4 * H), jnp.bfloat16),
        ],
        compiler_params=pltpu.CompilerParams(
            dimension_semantics=("parallel", "arbitrary"),
            vmem_limit_bytes=_vmem_budget_bytes()),
    )(x_p, lens_p, z_p, w_ih.astype(jnp.bfloat16), w_hh.astype(jnp.bfloat16),
      b, w_init.astype(jnp.bfloat16), b_init)
    return out[:T, :B, :]


def proj_logsoftmax(x, w, b, row_tile=256):
    """Row-tiled (N, H) @ (H, V) + log_softmax, 'parallel' grid over row tiles.
    Weight/bias live once in VMEM (no per-tile double-buffered weight DMA)."""
    N, H = x.shape
    V = w.shape[1]
    n_pad = pl.cdiv(N, row_tile) * row_tile
    x_p = x.astype(jnp.bfloat16)
    if n_pad != N:
        x_p = jnp.pad(x_p, ((0, n_pad - N), (0, 0)))
    out = pl.pallas_call(
        _proj_logsoftmax_kernel,
        out_shape=jax.ShapeDtypeStruct((n_pad, V), jnp.float32),
        grid=(n_pad // row_tile,),
        in_specs=[pl.BlockSpec((row_tile, H), lambda i: (i, 0)),
                  VMEM_SPEC,     # (H, V) weight: single resident VMEM copy
                  VMEM_SPEC],    # (1, V) bias
        out_specs=pl.BlockSpec((row_tile, V), lambda i: (i, 0)),
        compiler_params=pltpu.CompilerParams(
            dimension_semantics=("parallel",),
            vmem_limit_bytes=_vmem_budget_bytes()),
    )(x_p, w.astype(jnp.bfloat16), b)
    return out[:N]


# ----------------------------- model ---------------------------------------

def init_params(key, vocab_size, embed_size, hidden_size, z_dim, pad_idx):
    keys = jax.random.split(key, 18)
    k_lstm = 1.0 / np.sqrt(hidden_size)

    def uni(k, shape, scale):
        return jax.random.uniform(k, shape, jnp.float32, -scale, scale)

    def emb(k):
        e = jax.random.normal(k, (vocab_size, embed_size), jnp.float32)
        return e.at[pad_idx].set(0.0).astype(jnp.bfloat16)  # bf16 table, pad row 0

    bf = jnp.bfloat16
    p = {
        # encoder
        "enc_embedding": emb(keys[0]),
        "enc_w_ih": uni(keys[1], (embed_size, 4 * hidden_size), k_lstm).astype(bf),
        "enc_w_hh": uni(keys[2], (hidden_size, 4 * hidden_size), k_lstm).astype(bf),
        "enc_b": uni(keys[3], (1, 4 * hidden_size), k_lstm)
                 + uni(keys[4], (1, 4 * hidden_size), k_lstm),  # b_ih + b_hh (f32)
        "enc_out_w": uni(keys[5], (2 * hidden_size, 2 * z_dim),
                         1.0 / np.sqrt(2 * hidden_size)).astype(bf),
        "enc_out_b": uni(keys[6], (1, 2 * z_dim), 1.0 / np.sqrt(2 * hidden_size)),
        # decoder
        "dec_embedding": emb(keys[7]),
        "init_h_w": uni(keys[8], (z_dim, hidden_size), 1.0 / np.sqrt(z_dim)).astype(bf),
        "init_h_b": uni(keys[9], (1, hidden_size), 1.0 / np.sqrt(z_dim)),
        "init_c_w": uni(keys[10], (z_dim, hidden_size), 1.0 / np.sqrt(z_dim)).astype(bf),
        "init_c_b": uni(keys[11], (1, hidden_size), 1.0 / np.sqrt(z_dim)),
        "dec_w_ih": uni(keys[12], (embed_size, 4 * hidden_size), k_lstm).astype(bf),
        "dec_w_hh": uni(keys[13], (hidden_size, 4 * hidden_size), k_lstm).astype(bf),
        "dec_b": uni(keys[14], (1, 4 * hidden_size), k_lstm)
                 + uni(keys[15], (1, 4 * hidden_size), k_lstm),
        "out_w": uni(keys[16], (hidden_size, vocab_size),
                     1.0 / np.sqrt(hidden_size)).astype(bf),
        "out_b": uni(keys[17], (1, vocab_size), 1.0 / np.sqrt(hidden_size)),
    }
    return p


def rnnvae_forward(params, enc_input, dec_input, length_np, key,
                   dropout_rate=0.25, training=True):
    # torch.sort(length, descending=True) / unsort permutation (host-side,
    # lengths are known statically just like pack_padded_sequence requires).
    sorted_idx_np = np.argsort(-length_np, kind="stable")
    reversed_idx_np = np.argsort(sorted_idx_np, kind="stable")
    sorted_len_np = length_np[sorted_idx_np]
    sorted_idx = jnp.asarray(sorted_idx_np)
    reversed_idx = jnp.asarray(reversed_idx_np)
    sorted_len = jnp.asarray(sorted_len_np, jnp.int32)

    enc_s = enc_input[sorted_idx]
    dec_s = dec_input[sorted_idx]

    # -------- encoder: embedding -> packed LSTM (+ fused output proj) -------
    emb_enc = params["enc_embedding"][enc_s]              # (B, T, E) bf16
    x_tbe = jnp.transpose(emb_enc, (1, 0, 2))             # time-major
    mu_logvar = lstm_encoder_mu_logvar(
        x_tbe, sorted_len[:, None], params["enc_w_ih"], params["enc_w_hh"],
        params["enc_b"], params["enc_out_w"], params["enc_out_b"])
    z2 = mu_logvar.shape[-1]
    mu, logvar = mu_logvar[:, :z2 // 2], mu_logvar[:, z2 // 2:]

    # -------- reparameterize -------------------------------------------------
    key_eps, key_drop = jax.random.split(key)
    eps = jax.random.normal(key_eps, mu.shape, dtype=mu.dtype)
    z = mu + jnp.exp(0.5 * logvar) * eps

    # -------- decoder ---------------------------------------------------------
    emb_dec = params["dec_embedding"][dec_s]              # (B, Td, E) bf16
    if training and dropout_rate > 0.0:
        # F.dropout(training=True): deterministic key stands in for torch RNG
        keep = jax.random.bernoulli(key_drop, 1.0 - dropout_rate, emb_dec.shape)
        emb_dec = jnp.where(keep, emb_dec / (1.0 - dropout_rate), 0.0)
    x_dec_tbe = jnp.transpose(emb_dec, (1, 0, 2))

    # init_h / init_c fused into the decoder kernel (one (z, 2H) matmul).
    w_init = jnp.concatenate([params["init_h_w"], params["init_c_w"]], axis=1)
    b_init = jnp.concatenate([params["init_h_b"], params["init_c_b"]], axis=1)

    out_tbh = lstm_decoder_outputs(
        x_dec_tbe, (sorted_len + 1)[:, None], z,
        params["dec_w_ih"], params["dec_w_hh"], params["dec_b"],
        w_init, b_init)                                    # (T, B, H) bf16
    T_out = int(sorted_len_np.max()) + 1                   # pad_packed max length
    out_bth = jnp.transpose(out_tbh[:T_out], (1, 0, 2))
    out_bth = out_bth[reversed_idx]                        # unsort

    B, T_o, H = out_bth.shape
    flat = out_bth.reshape(B * T_o, H)
    logp_flat = proj_logsoftmax(flat, params["out_w"], params["out_b"],
                                row_tile=256)
    logp = logp_flat.reshape(B, T_o, -1)
    # note: mu/logvar are returned in SORTED order, matching the PyTorch code.
    return logp, mu, logvar


# ----------------------------- main -----------------------------------------

if __name__ == "__main__":
    vocab_size = 50
    embed_size = 16
    time_step = 8
    hidden_size = 32
    z_dim = 8
    dropout_rate = 0.25
    bos_idx, eos_idx, pad_idx = 1, 2, 0

    B = 4
    key = jax.random.PRNGKey(0)
    k_param, k_enc, k_dec, k_fwd = jax.random.split(key, 4)

    params = init_params(k_param, vocab_size, embed_size, hidden_size,
                         z_dim, pad_idx)

    # distinct lengths (torch.sort is not stable; distinct lengths avoid ties)
    length_np = np.array([6, 8, 4, 7], dtype=np.int32)

    enc_input = jax.random.randint(k_enc, (B, time_step), 3, vocab_size,
                                   dtype=jnp.int32)
    dec_input = jax.random.randint(k_dec, (B, time_step + 1), 3, vocab_size,
                                   dtype=jnp.int32)
    dec_input = dec_input.at[:, 0].set(bos_idx)
    # zero out padded positions like a real PTB batch would have pad tokens
    t_idx = np.arange(time_step)[None, :]
    enc_input = jnp.where(jnp.asarray(t_idx < length_np[:, None]),
                          enc_input, pad_idx)

    logp, mu, logvar = rnnvae_forward(params, enc_input, dec_input, length_np,
                                      k_fwd, dropout_rate=dropout_rate,
                                      training=True)
    jax.block_until_ready((logp, mu, logvar))

    assert logp.shape == (B, int(length_np.max()) + 1, vocab_size)
    assert mu.shape == (B, z_dim) and logvar.shape == (B, z_dim)
    assert bool(jnp.all(jnp.isfinite(logp)))
    print("KERNEL_OK")
</pallas_src>

<mosaic_0001>
module attributes {stable_mosaic.version = 11 : i64} {
  func.func @_lstm_enc_kernel(%arg0: i32, %arg1: i32, %arg2: memref<8x16x16xbf16, #tpu.memory_space<vmem>>, %arg3: memref<16x1xi32, #tpu.memory_space<vmem>>, %arg4: memref<16x128xbf16, #tpu.memory_space<vmem>>, %arg5: memref<32x128xbf16, #tpu.memory_space<vmem>>, %arg6: memref<1x128xf32, #tpu.memory_space<vmem>>, %arg7: memref<64x16xbf16, #tpu.memory_space<vmem>>, %arg8: memref<1x16xf32, #tpu.memory_space<vmem>>, %arg9: memref<16x16xf32, #tpu.memory_space<vmem>>, %arg10: memref<16x32xf32, #tpu.memory_space<vmem>>, %arg11: memref<16x32xf32, #tpu.memory_space<vmem>>, %arg12: memref<8x16x128xbf16, #tpu.memory_space<vmem>>) attributes {dimension_semantics = [#tpu.dimension_semantics<parallel>, #tpu.dimension_semantics<arbitrary>], iteration_bounds = array<i64: 1, 1>, scalar_prefetch = 0 : i64, scratch_operands = 3 : i64, tpu.core_type = #tpu.core_type<tc>, window_params = [{transform_indices = @transform_0, window_bounds = array<i64: 8, 16, 16>}, {transform_indices = @transform_1, window_bounds = array<i64: 16, 1>}, {pipeline_mode = #tpu.pipeline_mode<synchronous>, transform_indices = @transform_2, window_bounds = array<i64: 16, 128>}, {pipeline_mode = #tpu.pipeline_mode<synchronous>, transform_indices = @transform_3, window_bounds = array<i64: 32, 128>}, {pipeline_mode = #tpu.pipeline_mode<synchronous>, transform_indices = @transform_4, window_bounds = array<i64: 1, 128>}, {pipeline_mode = #tpu.pipeline_mode<synchronous>, transform_indices = @transform_5, window_bounds = array<i64: 64, 16>}, {pipeline_mode = #tpu.pipeline_mode<synchronous>, transform_indices = @transform_6, window_bounds = array<i64: 1, 16>}, {transform_indices = @transform_7, window_bounds = array<i64: 16, 16>}]} {
    %c0_i32 = arith.constant 0 : i32
    %0 = arith.cmpi eq, %arg1, %c0_i32 : i32
    %1 = arith.extui %0 : i1 to i32
    %c0_i32_0 = arith.constant 0 : i32
    %2 = arith.cmpi ne, %1, %c0_i32_0 : i32
    scf.if %2 {
      %cst_81 = arith.constant 0.000000e+00 : f32
      %372 = vector.broadcast %cst_81 : f32 to vector<16x32xf32>
      %c0_82 = arith.constant 0 : index
      %c0_83 = arith.constant 0 : index
      %373 = vector.load %arg10[%c0_82, %c0_83] : memref<16x32xf32, #tpu.memory_space<vmem>>, vector<16x32xf32>
      tpu.vector_store %arg10[%c0_82, %c0_83], %372 {strides = array<i32>} : memref<16x32xf32, #tpu.memory_space<vmem>>, vector<16x32xf32>,
      %cst_84 = arith.constant 0.000000e+00 : f32
      %374 = vector.broadcast %cst_84 : f32 to vector<16x32xf32>
      %c0_85 = arith.constant 0 : index
      %c0_86 = arith.constant 0 : index
      %375 = vector.load %arg11[%c0_85, %c0_86] : memref<16x32xf32, #tpu.memory_space<vmem>>, vector<16x32xf32>
      tpu.vector_store %arg11[%c0_85, %c0_86], %374 {strides = array<i32>} : memref<16x32xf32, #tpu.memory_space<vmem>>, vector<16x32xf32>,
    } else {
    }
    %c0 = arith.constant 0 : index
    %c0_1 = arith.constant 0 : index
    %c0_2 = arith.constant 0 : index
    %3 = vector.load %arg2[%c0, %c0_1, %c0_2] : memref<8x16x16xbf16, #tpu.memory_space<vmem>>, vector<8x16x16xbf16>
    %4 = vector.shape_cast %3 : vector<8x16x16xbf16> to vector<128x16xbf16>
    %c0_3 = arith.constant 0 : index
    %c0_4 = arith.constant 0 : index
    %5 = vector.load %arg4[%c0_3, %c0_4] : memref<16x128xbf16, #tpu.memory_space<vmem>>, vector<16x128xbf16>
    %cst = arith.constant dense<0.000000e+00> : vector<128x128xf32>
    %6 = tpu.matmul %4, %5, %cst {dimension_numbers = #tpu.dot_dimension_numbers<[1], [0], [0], [1], [0, 0, 1, 1], [], []>} : vector<128x16xbf16>, vector<16x128xbf16>, vector<128x128xf32> -> vector<128x128xf32>
    %7 = arith.truncf %6 : vector<128x128xf32> to vector<128x128xbf16>
    %8 = vector.shape_cast %7 : vector<128x128xbf16> to vector<8x16x128xbf16>
    %c0_5 = arith.constant 0 : index
    %c0_6 = arith.constant 0 : index
    %c0_7 = arith.constant 0 : index
    %9 = vector.load %arg12[%c0_5, %c0_6, %c0_7] : memref<8x16x128xbf16, #tpu.memory_space<vmem>>, vector<8x16x128xbf16>
    tpu.vector_store %arg12[%c0_5, %c0_6, %c0_7], %8 {strides = array<i32>} : memref<8x16x128xbf16, #tpu.memory_space<vmem>>, vector<8x16x128xbf16>,
    %c0_8 = arith.constant 0 : index
    %c0_9 = arith.constant 0 : index
    %10 = vector.load %arg5[%c0_8, %c0_9] : memref<32x128xbf16, #tpu.memory_space<vmem>>, vector<32x128xbf16>
    %c0_10 = arith.constant 0 : index
    %c0_11 = arith.constant 0 : index
    %11 = vector.load %arg6[%c0_10, %c0_11] : memref<1x128xf32, #tpu.memory_space<vmem>>, vector<1x128xf32>
    %c0_12 = arith.constant 0 : index
    %c0_13 = arith.constant 0 : index
    %12 = vector.load %arg3[%c0_12, %c0_13] : memref<16x1xi32, #tpu.memory_space<vmem>>, vector<16x1xi32>
    %c0_14 = arith.constant 0 : index
    %c0_15 = arith.constant 0 : index
    %13 = vector.load %arg10[%c0_14, %c0_15] : memref<16x32xf32, #tpu.memory_space<vmem>>, vector<16x32xf32>
    %c0_16 = arith.constant 0 : index
    %c0_17 = arith.constant 0 : index
    %14 = vector.load %arg11[%c0_16, %c0_17] : memref<16x32xf32, #tpu.memory_space<vmem>>, vector<16x32xf32>
    %c0_i32_18 = arith.constant 0 : i32
    %15 = arith.index_cast %c0_i32_18 : i32 to index
    %c0_19 = arith.constant 0 : index
    %c0_20 = arith.constant 0 : index
    %16 = vector.load %arg12[%15, %c0_19, %c0_20] : memref<8x16x128xbf16, #tpu.memory_space<vmem>>, vector<1x16x128xbf16>
    %17 = vector.shape_cast %16 : vector<1x16x128xbf16> to vector<16x128xbf16>
    %18 = arith.extf %17 : vector<16x128xbf16> to vector<16x128xf32>
    %19 = vector.broadcast %11 : vector<1x128xf32> to vector<16x128xf32>
    %20 = arith.addf %18, %19 : vector<16x128xf32>
    %21 = arith.truncf %13 : vector<16x32xf32> to vector<16x32xbf16>
    %cst_21 = arith.constant dense<0.000000e+00> : vector<16x128xf32>
    %22 = tpu.matmul %21, %10, %cst_21 {dimension_numbers = #tpu.dot_dimension_numbers<[1], [0], [0], [1], [0, 0, 1, 1], [], []>} : vector<16x32xbf16>, vector<32x128xbf16>, vector<16x128xf32> -> vector<16x128xf32>
    %23 = arith.addf %20, %22 : vector<16x128xf32>
    %24 = vector.extract_strided_slice %23 {offsets = [0, 0], sizes = [16, 32], strides = [1, 1]} : vector<16x128xf32> to vector<16x32xf32>
    %25 = arith.negf %24 : vector<16x32xf32>
    %26 = math.exp %25 : vector<16x32xf32>
    %cst_22 = arith.constant 1.000000e+00 : f32
    %27 = vector.broadcast %cst_22 : f32 to vector<16x32xf32>
    %28 = arith.addf %27, %26 : vector<16x32xf32>
    %29 = arith.divf %27, %28 : vector<16x32xf32>
    %30 = vector.extract_strided_slice %23 {offsets = [0, 32], sizes = [16, 32], strides = [1, 1]} : vector<16x128xf32> to vector<16x32xf32>
    %31 = arith.negf %30 : vector<16x32xf32>
    %32 = math.exp %31 : vector<16x32xf32>
    %cst_23 = arith.constant 1.000000e+00 : f32
    %33 = vector.broadcast %cst_23 : f32 to vector<16x32xf32>
    %34 = arith.addf %33, %32 : vector<16x32xf32>
    %35 = arith.divf %33, %34 : vector<16x32xf32>
    %36 = vector.extract_strided_slice %23 {offsets = [0, 64], sizes = [16, 32], strides = [1, 1]} : vector<16x128xf32> to vector<16x32xf32>
    %37 = math.tanh %36 : vector<16x32xf32>
    %38 = vector.extract_strided_slice %23 {offsets = [0, 96], sizes = [16, 32], strides = [1, 1]} : vector<16x128xf32> to vector<16x32xf32>
    %39 = arith.negf %38 : vector<16x32xf32>
    %40 = math.exp %39 : vector<16x32xf32>
    %cst_24 = arith.constant 1.000000e+00 : f32
    %41 = vector.broadcast %cst_24 : f32 to vector<16x32xf32>
    %42 = arith.addf %41, %40 : vector<16x32xf32>
    %43 = arith.divf %41, %42 : vector<16x32xf32>
    %44 = arith.mulf %35, %14 : vector<16x32xf32>
    %45 = arith.mulf %29, %37 : vector<16x32xf32>
    %46 = arith.addf %44, %45 : vector<16x32xf32>
    %47 = math.tanh %46 : vector<16x32xf32>
    %48 = arith.mulf %43, %47 : vector<16x32xf32>
    %c8_i32 = arith.constant 8 : i32
    %49 = arith.muli %arg1, %c8_i32 : i32
    %50 = arith.addi %49, %c0_i32_18 : i32
    %51 = vector.broadcast %50 : i32 to vector<16x1xi32>
    %52 = arith.cmpi slt, %51, %12 : vector<16x1xi32>
    %53 = vector.shape_cast %52 : vector<16x1xi1> to vector<16x1xi1>
    %54 = vector.broadcast %53 : vector<16x1xi1> to vector<16x32xi1>
    %55 = arith.select %54, %48, %13 : vector<16x32xi1>, vector<16x32xf32>
    %56 = vector.shape_cast %52 : vector<16x1xi1> to vector<16x1xi1>
    %57 = vector.broadcast %56 : vector<16x1xi1> to vector<16x32xi1>
    %58 = arith.select %57, %46, %14 : vector<16x32xi1>, vector<16x32xf32>
    %c1_i32 = arith.constant 1 : i32
    %59 = arith.index_cast %c1_i32 : i32 to index
    %c0_25 = arith.constant 0 : index
    %c0_26 = arith.constant 0 : index
    %60 = vector.load %arg12[%59, %c0_25, %c0_26] : memref<8x16x128xbf16, #tpu.memory_space<vmem>>, vector<1x16x128xbf16>
    %61 = vector.shape_cast %60 : vector<1x16x128xbf16> to vector<16x128xbf16>
    %62 = arith.extf %61 : vector<16x128xbf16> to vector<16x128xf32>
    %63 = vector.broadcast %11 : vector<1x128xf32> to vector<16x128xf32>
    %64 = arith.addf %62, %63 : vector<16x128xf32>
    %65 = arith.truncf %55 : vector<16x32xf32> to vector<16x32xbf16>
    %cst_27 = arith.constant dense<0.000000e+00> : vector<16x128xf32>
    %66 = tpu.matmul %65, %10, %cst_27 {dimension_numbers = #tpu.dot_dimension_numbers<[1], [0], [0], [1], [0, 0, 1, 1], [], []>} : vector<16x32xbf16>, vector<32x128xbf16>, vector<16x128xf32> -> vector<16x128xf32>
    %67 = arith.addf %64, %66 : vector<16x128xf32>
    %68 = vector.extract_strided_slice %67 {offsets = [0, 0], sizes = [16, 32], strides = [1, 1]} : vector<16x128xf32> to vector<16x32xf32>
    %69 = arith.negf %68 : vector<16x32xf32>
    %70 = math.exp %69 : vector<16x32xf32>
    %cst_28 = arith.constant 1.000000e+00 : f32
    %71 = vector.broadcast %cst_28 : f32 to vector<16x32xf32>
    %72 = arith.addf %71, %70 : vector<16x32xf32>
    %73 = arith.divf %71, %72 : vector<16x32xf32>
    %74 = vector.extract_strided_slice %67 {offsets = [0, 32], sizes = [16, 32], strides = [1, 1]} : vector<16x128xf32> to vector<16x32xf32>
    %75 = arith.negf %74 : vector<16x32xf32>
    %76 = math.exp %75 : vector<16x32xf32>
    %cst_29 = arith.constant 1.000000e+00 : f32
    %77 = vector.broadcast %cst_29 : f32 to vector<16x32xf32>
    %78 = arith.addf %77, %76 : vector<16x32xf32>
    %79 = arith.divf %77, %78 : vector<16x32xf32>
    %80 = vector.extract_strided_slice %67 {offsets = [0, 64], sizes = [16, 32], strides = [1, 1]} : vector<16x128xf32> to vector<16x32xf32>
    %81 = math.tanh %80 : vector<16x32xf32>
    %82 = vector.extract_strided_slice %67 {offsets = [0, 96], sizes = [16, 32], strides = [1, 1]} : vector<16x128xf32> to vector<16x32xf32>
    %83 = arith.negf %82 : vector<16x32xf32>
    %84 = math.exp %83 : vector<16x32xf32>
    %cst_30 = arith.constant 1.000000e+00 : f32
    %85 = vector.broadcast %cst_30 : f32 to vector<16x32xf32>
    %86 = arith.addf %85, %84 : vector<16x32xf32>
    %87 = arith.divf %85, %86 : vector<16x32xf32>
    %88 = arith.mulf %79, %58 : vector<16x32xf32>
    %89 = arith.mulf %73, %81 : vector<16x32xf32>
    %90 = arith.addf %88, %89 : vector<16x32xf32>
    %91 = math.tanh %90 : vector<16x32xf32>
    %92 = arith.mulf %87, %91 : vector<16x32xf32>
    %c8_i32_31 = arith.constant 8 : i32
    %93 = arith.muli %arg1, %c8_i32_31 : i32
    %94 = arith.addi %93, %c1_i32 : i32
    %95 = vector.broadcast %94 : i32 to vector<16x1xi32>
    %96 = arith.cmpi slt, %95, %12 : vector<16x1xi32>
    %97 = vector.shape_cast %96 : vector<16x1xi1> to vector<16x1xi1>
    %98 = vector.broadcast %97 : vector<16x1xi1> to vector<16x32xi1>
    %99 = arith.select %98, %92, %55 : vector<16x32xi1>, vector<16x32xf32>
    %100 = vector.shape_cast %96 : vector<16x1xi1> to vector<16x1xi1>
    %101 = vector.broadcast %100 : vector<16x1xi1> to vector<16x32xi1>
    %102 = arith.select %101, %90, %58 : vector<16x32xi1>, vector<16x32xf32>
    %c2_i32 = arith.constant 2 : i32
    %103 = arith.index_cast %c2_i32 : i32 to index
    %c0_32 = arith.constant 0 : index
    %c0_33 = arith.constant 0 : index
    %104 = vector.load %arg12[%103, %c0_32, %c0_33] : memref<8x16x128xbf16, #tpu.memory_space<vmem>>, vector<1x16x128xbf16>
    %105 = vector.shape_cast %104 : vector<1x16x128xbf16> to vector<16x128xbf16>
    %106 = arith.extf %105 : vector<16x128xbf16> to vector<16x128xf32>
    %107 = vector.broadcast %11 : vector<1x128xf32> to vector<16x128xf32>
    %108 = arith.addf %106, %107 : vector<16x128xf32>
    %109 = arith.truncf %99 : vector<16x32xf32> to vector<16x32xbf16>
    %cst_34 = arith.constant dense<0.000000e+00> : vector<16x128xf32>
    %110 = tpu.matmul %109, %10, %cst_34 {dimension_numbers = #tpu.dot_dimension_numbers<[1], [0], [0], [1], [0, 0, 1, 1], [], []>} : vector<16x32xbf16>, vector<32x128xbf16>, vector<16x128xf32> -> vector<16x128xf32>
    %111 = arith.addf %108, %110 : vector<16x128xf32>
    %112 = vector.extract_strided_slice %111 {offsets = [0, 0], sizes = [16, 32], strides = [1, 1]} : vector<16x128xf32> to vector<16x32xf32>
    %113 = arith.negf %112 : vector<16x32xf32>
    %114 = math.exp %113 : vector<16x32xf32>
    %cst_35 = arith.constant 1.000000e+00 : f32
    %115 = vector.broadcast %cst_35 : f32 to vector<16x32xf32>
    %116 = arith.addf %115, %114 : vector<16x32xf32>
    %117 = arith.divf %115, %116 : vector<16x32xf32>
    %118 = vector.extract_strided_slice %111 {offsets = [0, 32], sizes = [16, 32], strides = [1, 1]} : vector<16x128xf32> to vector<16x32xf32>
    %119 = arith.negf %118 : vector<16x32xf32>
    %120 = math.exp %119 : vector<16x32xf32>
    %cst_36 = arith.constant 1.000000e+00 : f32
    %121 = vector.broadcast %cst_36 : f32 to vector<16x32xf32>
    %122 = arith.addf %121, %120 : vector<16x32xf32>
    %123 = arith.divf %121, %122 : vector<16x32xf32>
    %124 = vector.extract_strided_slice %111 {offsets = [0, 64], sizes = [16, 32], strides = [1, 1]} : vector<16x128xf32> to vector<16x32xf32>
    %125 = math.tanh %124 : vector<16x32xf32>
    %126 = vector.extract_strided_slice %111 {offsets = [0, 96], sizes = [16, 32], strides = [1, 1]} : vector<16x128xf32> to vector<16x32xf32>
    %127 = arith.negf %126 : vector<16x32xf32>
    %128 = math.exp %127 : vector<16x32xf32>
    %cst_37 = arith.constant 1.000000e+00 : f32
    %129 = vector.broadcast %cst_37 : f32 to vector<16x32xf32>
    %130 = arith.addf %129, %128 : vector<16x32xf32>
    %131 = arith.divf %129, %130 : vector<16x32xf32>
    %132 = arith.mulf %123, %102 : vector<16x32xf32>
    %133 = arith.mulf %117, %125 : vector<16x32xf32>
    %134 = arith.addf %132, %133 : vector<16x32xf32>
    %135 = math.tanh %134 : vector<16x32xf32>
    %136 = arith.mulf %131, %135 : vector<16x32xf32>
    %c8_i32_38 = arith.constant 8 : i32
    %137 = arith.muli %arg1, %c8_i32_38 : i32
    %138 = arith.addi %137, %c2_i32 : i32
    %139 = vector.broadcast %138 : i32 to vector<16x1xi32>
    %140 = arith.cmpi slt, %139, %12 : vector<16x1xi32>
    %141 = vector.shape_cast %140 : vector<16x1xi1> to vector<16x1xi1>
    %142 = vector.broadcast %141 : vector<16x1xi1> to vector<16x32xi1>
    %143 = arith.select %142, %136, %99 : vector<16x32xi1>, vector<16x32xf32>
    %144 = vector.shape_cast %140 : vector<16x1xi1> to vector<16x1xi1>
    %145 = vector.broadcast %144 : vector<16x1xi1> to vector<16x32xi1>
    %146 = arith.select %145, %134, %102 : vector<16x32xi1>, vector<16x32xf32>
    %c3_i32 = arith.constant 3 : i32
    %147 = arith.index_cast %c3_i32 : i32 to index
    %c0_39 = arith.constant 0 : index
    %c0_40 = arith.constant 0 : index
    %148 = vector.load %arg12[%147, %c0_39, %c0_40] : memref<8x16x128xbf16, #tpu.memory_space<vmem>>, vector<1x16x128xbf16>
    %149 = vector.shape_cast %148 : vector<1x16x128xbf16> to vector<16x128xbf16>
    %150 = arith.extf %149 : vector<16x128xbf16> to vector<16x128xf32>
    %151 = vector.broadcast %11 : vector<1x128xf32> to vector<16x128xf32>
    %152 = arith.addf %150, %151 : vector<16x128xf32>
    %153 = arith.truncf %143 : vector<16x32xf32> to vector<16x32xbf16>
    %cst_41 = arith.constant dense<0.000000e+00> : vector<16x128xf32>
    %154 = tpu.matmul %153, %10, %cst_41 {dimension_numbers = #tpu.dot_dimension_numbers<[1], [0], [0], [1], [0, 0, 1, 1], [], []>} : vector<16x32xbf16>, vector<32x128xbf16>, vector<16x128xf32> -> vector<16x128xf32>
    %155 = arith.addf %152, %154 : vector<16x128xf32>
    %156 = vector.extract_strided_slice %155 {offsets = [0, 0], sizes = [16, 32], strides = [1, 1]} : vector<16x128xf32> to vector<16x32xf32>
    %157 = arith.negf %156 : vector<16x32xf32>
    %158 = math.exp %157 : vector<16x32xf32>
    %cst_42 = arith.constant 1.000000e+00 : f32
    %159 = vector.broadcast %cst_42 : f32 to vector<16x32xf32>
    %160 = arith.addf %159, %158 : vector<16x32xf32>
    %161 = arith.divf %159, %160 : vector<16x32xf32>
    %162 = vector.extract_strided_slice %155 {offsets = [0, 32], sizes = [16, 32], strides = [1, 1]} : vector<16x128xf32> to vector<16x32xf32>
    %163 = arith.negf %162 : vector<16x32xf32>
    %164 = math.exp %163 : vector<16x32xf32>
    %cst_43 = arith.constant 1.000000e+00 : f32
    %165 = vector.broadcast %cst_43 : f32 to vector<16x32xf32>
    %166 = arith.addf %165, %164 : vector<16x32xf32>
    %167 = arith.divf %165, %166 : vector<16x32xf32>
    %168 = vector.extract_strided_slice %155 {offsets = [0, 64], sizes = [16, 32], strides = [1, 1]} : vector<16x128xf32> to vector<16x32xf32>
    %169 = math.tanh %168 : vector<16x32xf32>
    %170 = vector.extract_strided_slice %155 {offsets = [0, 96], sizes = [16, 32], strides = [1, 1]} : vector<16x128xf32> to vector<16x32xf32>
    %171 = arith.negf %170 : vector<16x32xf32>
    %172 = math.exp %171 : vector<16x32xf32>
    %cst_44 = arith.constant 1.000000e+00 : f32
    %173 = vector.broadcast %cst_44 : f32 to vector<16x32xf32>
    %174 = arith.addf %173, %172 : vector<16x32xf32>
    %175 = arith.divf %173, %174 : vector<16x32xf32>
    %176 = arith.mulf %167, %146 : vector<16x32xf32>
    %177 = arith.mulf %161, %169 : vector<16x32xf32>
    %178 = arith.addf %176, %177 : vector<16x32xf32>
    %179 = math.tanh %178 : vector<16x32xf32>
    %180 = arith.mulf %175, %179 : vector<16x32xf32>
    %c8_i32_45 = arith.constant 8 : i32
    %181 = arith.muli %arg1, %c8_i32_45 : i32
    %182 = arith.addi %181, %c3_i32 : i32
    %183 = vector.broadcast %182 : i32 to vector<16x1xi32>
    %184 = arith.cmpi slt, %183, %12 : vector<16x1xi32>
    %185 = vector.shape_cast %184 : vector<16x1xi1> to vector<16x1xi1>
    %186 = vector.broadcast %185 : vector<16x1xi1> to vector<16x32xi1>
    %187 = arith.select %186, %180, %143 : vector<16x32xi1>, vector<16x32xf32>
    %188 = vector.shape_cast %184 : vector<16x1xi1> to vector<16x1xi1>
    %189 = vector.broadcast %188 : vector<16x1xi1> to vector<16x32xi1>
    %190 = arith.select %189, %178, %146 : vector<16x32xi1>, vector<16x32xf32>
    %c4_i32 = arith.constant 4 : i32
    %191 = arith.index_cast %c4_i32 : i32 to index
    %c0_46 = arith.constant 0 : index
    %c0_47 = arith.constant 0 : index
    %192 = vector.load %arg12[%191, %c0_46, %c0_47] : memref<8x16x128xbf16, #tpu.memory_space<vmem>>, vector<1x16x128xbf16>
    %193 = vector.shape_cast %192 : vector<1x16x128xbf16> to vector<16x128xbf16>
    %194 = arith.extf %193 : vector<16x128xbf16> to vector<16x128xf32>
    %195 = vector.broadcast %11 : vector<1x128xf32> to vector<16x128xf32>
    %196 = arith.addf %194, %195 : vector<16x128xf32>
    %197 = arith.truncf %187 : vector<16x32xf32> to vector<16x32xbf16>
    %cst_48 = arith.constant dense<0.000000e+00> : vector<16x128xf32>
    %198 = tpu.matmul %197, %10, %cst_48 {dimension_numbers = #tpu.dot_dimension_numbers<[1], [0], [0], [1], [0, 0, 1, 1], [], []>} : vector<16x32xbf16>, vector<32x128xbf16>, vector<16x128xf32> -> vector<16x128xf32>
    %199 = arith.addf %196, %198 : vector<16x128xf32>
    %200 = vector.extract_strided_slice %199 {offsets = [0, 0], sizes = [16, 32], strides = [1, 1]} : vector<16x128xf32> to vector<16x32xf32>
    %201 = arith.negf %200 : vector<16x32xf32>
    %202 = math.exp %201 : vector<16x32xf32>
    %cst_49 = arith.constant 1.000000e+00 : f32
    %203 = vector.broadcast %cst_49 : f32 to vector<16x32xf32>
    %204 = arith.addf %203, %202 : vector<16x32xf32>
    %205 = arith.divf %203, %204 : vector<16x32xf32>
    %206 = vector.extract_strided_slice %199 {offsets = [0, 32], sizes = [16, 32], strides = [1, 1]} : vector<16x128xf32> to vector<16x32xf32>
    %207 = arith.negf %206 : vector<16x32xf32>
    %208 = math.exp %207 : vector<16x32xf32>
    %cst_50 = arith.constant 1.000000e+00 : f32
    %209 = vector.broadcast %cst_50 : f32 to vector<16x32xf32>
    %210 = arith.addf %209, %208 : vector<16x32xf32>
    %211 = arith.divf %209, %210 : vector<16x32xf32>
    %212 = vector.extract_strided_slice %199 {offsets = [0, 64], sizes = [16, 32], strides = [1, 1]} : vector<16x128xf32> to vector<16x32xf32>
    %213 = math.tanh %212 : vector<16x32xf32>
    %214 = vector.extract_strided_slice %199 {offsets = [0, 96], sizes = [16, 32], strides = [1, 1]} : vector<16x128xf32> to vector<16x32xf32>
    %215 = arith.negf %214 : vector<16x32xf32>
    %216 = math.exp %215 : vector<16x32xf32>
    %cst_51 = arith.constant 1.000000e+00 : f32
    %217 = vector.broadcast %cst_51 : f32 to vector<16x32xf32>
    %218 = arith.addf %217, %216 : vector<16x32xf32>
    %219 = arith.divf %217, %218 : vector<16x32xf32>
    %220 = arith.mulf %211, %190 : vector<16x32xf32>
    %221 = arith.mulf %205, %213 : vector<16x32xf32>
    %222 = arith.addf %220, %221 : vector<16x32xf32>
    %223 = math.tanh %222 : vector<16x32xf32>
    %224 = arith.mulf %219, %223 : vector<16x32xf32>
    %c8_i32_52 = arith.constant 8 : i32
    %225 = arith.muli %arg1, %c8_i32_52 : i32
    %226 = arith.addi %225, %c4_i32 : i32
    %227 = vector.broadcast %226 : i32 to vector<16x1xi32>
    %228 = arith.cmpi slt, %227, %12 : vector<16x1xi32>
    %229 = vector.shape_cast %228 : vector<16x1xi1> to vector<16x1xi1>
    %230 = vector.broadcast %229 : vector<16x1xi1> to vector<16x32xi1>
    %231 = arith.select %230, %224, %187 : vector<16x32xi1>, vector<16x32xf32>
    %232 = vector.shape_cast %228 : vector<16x1xi1> to vector<16x1xi1>
    %233 = vector.broadcast %232 : vector<16x1xi1> to vector<16x32xi1>
    %234 = arith.select %233, %222, %190 : vector<16x32xi1>, vector<16x32xf32>
    %c5_i32 = arith.constant 5 : i32
    %235 = arith.index_cast %c5_i32 : i32 to index
    %c0_53 = arith.constant 0 : index
    %c0_54 = arith.constant 0 : index
    %236 = vector.load %arg12[%235, %c0_53, %c0_54] : memref<8x16x128xbf16, #tpu.memory_space<vmem>>, vector<1x16x128xbf16>
    %237 = vector.shape_cast %236 : vector<1x16x128xbf16> to vector<16x128xbf16>
    %238 = arith.extf %237 : vector<16x128xbf16> to vector<16x128xf32>
    %239 = vector.broadcast %11 : vector<1x128xf32> to vector<16x128xf32>
    %240 = arith.addf %238, %239 : vector<16x128xf32>
    %241 = arith.truncf %231 : vector<16x32xf32> to vector<16x32xbf16>
    %cst_55 = arith.constant dense<0.000000e+00> : vector<16x128xf32>
    %242 = tpu.matmul %241, %10, %cst_55 {dimension_numbers = #tpu.dot_dimension_numbers<[1], [0], [0], [1], [0, 0, 1, 1], [], []>} : vector<16x32xbf16>, vector<32x128xbf16>, vector<16x128xf32> -> vector<16x128xf32>
    %243 = arith.addf %240, %242 : vector<16x128xf32>
    %244 = vector.extract_strided_slice %243 {offsets = [0, 0], sizes = [16, 32], strides = [1, 1]} : vector<16x128xf32> to vector<16x32xf32>
    %245 = arith.negf %244 : vector<16x32xf32>
    %246 = math.exp %245 : vector<16x32xf32>
    %cst_56 = arith.constant 1.000000e+00 : f32
    %247 = vector.broadcast %cst_56 : f32 to vector<16x32xf32>
    %248 = arith.addf %247, %246 : vector<16x32xf32>
    %249 = arith.divf %247, %248 : vector<16x32xf32>
    %250 = vector.extract_strided_slice %243 {offsets = [0, 32], sizes = [16, 32], strides = [1, 1]} : vector<16x128xf32> to vector<16x32xf32>
    %251 = arith.negf %250 : vector<16x32xf32>
    %252 = math.exp %251 : vector<16x32xf32>
    %cst_57 = arith.constant 1.000000e+00 : f32
    %253 = vector.broadcast %cst_57 : f32 to vector<16x32xf32>
    %254 = arith.addf %253, %252 : vector<16x32xf32>
    %255 = arith.divf %253, %254 : vector<16x32xf32>
    %256 = vector.extract_strided_slice %243 {offsets = [0, 64], sizes = [16, 32], strides = [1, 1]} : vector<16x128xf32> to vector<16x32xf32>
    %257 = math.tanh %256 : vector<16x32xf32>
    %258 = vector.extract_strided_slice %243 {offsets = [0, 96], sizes = [16, 32], strides = [1, 1]} : vector<16x128xf32> to vector<16x32xf32>
    %259 = arith.negf %258 : vector<16x32xf32>
    %260 = math.exp %259 : vector<16x32xf32>
    %cst_58 = arith.constant 1.000000e+00 : f32
    %261 = vector.broadcast %cst_58 : f32 to vector<16x32xf32>
    %262 = arith.addf %261, %260 : vector<16x32xf32>
    %263 = arith.divf %261, %262 : vector<16x32xf32>
    %264 = arith.mulf %255, %234 : vector<16x32xf32>
    %265 = arith.mulf %249, %257 : vector<16x32xf32>
    %266 = arith.addf %264, %265 : vector<16x32xf32>
    %267 = math.tanh %266 : vector<16x32xf32>
    %268 = arith.mulf %263, %267 : vector<16x32xf32>
    %c8_i32_59 = arith.constant 8 : i32
    %269 = arith.muli %arg1, %c8_i32_59 : i32
    %270 = arith.addi %269, %c5_i32 : i32
    %271 = vector.broadcast %270 : i32 to vector<16x1xi32>
    %272 = arith.cmpi slt, %271, %12 : vector<16x1xi32>
    %273 = vector.shape_cast %272 : vector<16x1xi1> to vector<16x1xi1>
    %274 = vector.broadcast %273 : vector<16x1xi1> to vector<16x32xi1>
    %275 = arith.select %274, %268, %231 : vector<16x32xi1>, vector<16x32xf32>
    %276 = vector.shape_cast %272 : vector<16x1xi1> to vector<16x1xi1>
    %277 = vector.broadcast %276 : vector<16x1xi1> to vector<16x32xi1>
    %278 = arith.select %277, %266, %234 : vector<16x32xi1>, vector<16x32xf32>
    %c6_i32 = arith.constant 6 : i32
    %279 = arith.index_cast %c6_i32 : i32 to index
    %c0_60 = arith.constant 0 : index
    %c0_61 = arith.constant 0 : index
    %280 = vector.load %arg12[%279, %c0_60, %c0_61] : memref<8x16x128xbf16, #tpu.memory_space<vmem>>, vector<1x16x128xbf16>
    %281 = vector.shape_cast %280 : vector<1x16x128xbf16> to vector<16x128xbf16>
    %282 = arith.extf %281 : vector<16x128xbf16> to vector<16x128xf32>
    %283 = vector.broadcast %11 : vector<1x128xf32> to vector<16x128xf32>
    %284 = arith.addf %282, %283 : vector<16x128xf32>
    %285 = arith.truncf %275 : vector<16x32xf32> to vector<16x32xbf16>
    %cst_62 = arith.constant dense<0.000000e+00> : vector<16x128xf32>
    %286 = tpu.matmul %285, %10, %cst_62 {dimension_numbers = #tpu.dot_dimension_numbers<[1], [0], [0], [1], [0, 0, 1, 1], [], []>} : vector<16x32xbf16>, vector<32x128xbf16>, vector<16x128xf32> -> vector<16x128xf32>
    %287 = arith.addf %284, %286 : vector<16x128xf32>
    %288 = vector.extract_strided_slice %287 {offsets = [0, 0], sizes = [16, 32], strides = [1, 1]} : vector<16x128xf32> to vector<16x32xf32>
    %289 = arith.negf %288 : vector<16x32xf32>
    %290 = math.exp %289 : vector<16x32xf32>
    %cst_63 = arith.constant 1.000000e+00 : f32
    %291 = vector.broadcast %cst_63 : f32 to vector<16x32xf32>
    %292 = arith.addf %291, %290 : vector<16x32xf32>
    %293 = arith.divf %291, %292 : vector<16x32xf32>
    %294 = vector.extract_strided_slice %287 {offsets = [0, 32], sizes = [16, 32], strides = [1, 1]} : vector<16x128xf32> to vector<16x32xf32>
    %295 = arith.negf %294 : vector<16x32xf32>
    %296 = math.exp %295 : vector<16x32xf32>
    %cst_64 = arith.constant 1.000000e+00 : f32
    %297 = vector.broadcast %cst_64 : f32 to vector<16x32xf32>
    %298 = arith.addf %297, %296 : vector<16x32xf32>
    %299 = arith.divf %297, %298 : vector<16x32xf32>
    %300 = vector.extract_strided_slice %287 {offsets = [0, 64], sizes = [16, 32], strides = [1, 1]} : vector<16x128xf32> to vector<16x32xf32>
    %301 = math.tanh %300 : vector<16x32xf32>
    %302 = vector.extract_strided_slice %287 {offsets = [0, 96], sizes = [16, 32], strides = [1, 1]} : vector<16x128xf32> to vector<16x32xf32>
    %303 = arith.negf %302 : vector<16x32xf32>
    %304 = math.exp %303 : vector<16x32xf32>
    %cst_65 = arith.constant 1.000000e+00 : f32
    %305 = vector.broadcast %cst_65 : f32 to vector<16x32xf32>
    %306 = arith.addf %305, %304 : vector<16x32xf32>
    %307 = arith.divf %305, %306 : vector<16x32xf32>
    %308 = arith.mulf %299, %278 : vector<16x32xf32>
    %309 = arith.mulf %293, %301 : vector<16x32xf32>
    %310 = arith.addf %308, %309 : vector<16x32xf32>
    %311 = math.tanh %310 : vector<16x32xf32>
    %312 = arith.mulf %307, %311 : vector<16x32xf32>
    %c8_i32_66 = arith.constant 8 : i32
    %313 = arith.muli %arg1, %c8_i32_66 : i32
    %314 = arith.addi %313, %c6_i32 : i32
    %315 = vector.broadcast %314 : i32 to vector<16x1xi32>
    %316 = arith.cmpi slt, %315, %12 : vector<16x1xi32>
    %317 = vector.shape_cast %316 : vector<16x1xi1> to vector<16x1xi1>
    %318 = vector.broadcast %317 : vector<16x1xi1> to vector<16x32xi1>
    %319 = arith.select %318, %312, %275 : vector<16x32xi1>, vector<16x32xf32>
    %320 = vector.shape_cast %316 : vector<16x1xi1> to vector<16x1xi1>
    %321 = vector.broadcast %320 : vector<16x1xi1> to vector<16x32xi1>
    %322 = arith.select %321, %310, %278 : vector<16x32xi1>, vector<16x32xf32>
    %c7_i32 = arith.constant 7 : i32
    %323 = arith.index_cast %c7_i32 : i32 to index
    %c0_67 = arith.constant 0 : index
    %c0_68 = arith.constant 0 : index
    %324 = vector.load %arg12[%323, %c0_67, %c0_68] : memref<8x16x128xbf16, #tpu.memory_space<vmem>>, vector<1x16x128xbf16>
    %325 = vector.shape_cast %324 : vector<1x16x128xbf16> to vector<16x128xbf16>
    %326 = arith.extf %325 : vector<16x128xbf16> to vector<16x128xf32>
    %327 = vector.broadcast %11 : vector<1x128xf32> to vector<16x128xf32>
    %328 = arith.addf %326, %327 : vector<16x128xf32>
    %329 = arith.truncf %319 : vector<16x32xf32> to vector<16x32xbf16>
    %cst_69 = arith.constant dense<0.000000e+00> : vector<16x128xf32>
    %330 = tpu.matmul %329, %10, %cst_69 {dimension_numbers = #tpu.dot_dimension_numbers<[1], [0], [0], [1], [0, 0, 1, 1], [], []>} : vector<16x32xbf16>, vector<32x128xbf16>, vector<16x128xf32> -> vector<16x128xf32>
    %331 = arith.addf %328, %330 : vector<16x128xf32>
    %332 = vector.extract_strided_slice %331 {offsets = [0, 0], sizes = [16, 32], strides = [1, 1]} : vector<16x128xf32> to vector<16x32xf32>
    %333 = arith.negf %332 : vector<16x32xf32>
    %334 = math.exp %333 : vector<16x32xf32>
    %cst_70 = arith.constant 1.000000e+00 : f32
    %335 = vector.broadcast %cst_70 : f32 to vector<16x32xf32>
    %336 = arith.addf %335, %334 : vector<16x32xf32>
    %337 = arith.divf %335, %336 : vector<16x32xf32>
    %338 = vector.extract_strided_slice %331 {offsets = [0, 32], sizes = [16, 32], strides = [1, 1]} : vector<16x128xf32> to vector<16x32xf32>
    %339 = arith.negf %338 : vector<16x32xf32>
    %340 = math.exp %339 : vector<16x32xf32>
    %cst_71 = arith.constant 1.000000e+00 : f32
    %341 = vector.broadcast %cst_71 : f32 to vector<16x32xf32>
    %342 = arith.addf %341, %340 : vector<16x32xf32>
    %343 = arith.divf %341, %342 : vector<16x32xf32>
    %344 = vector.extract_strided_slice %331 {offsets = [0, 64], sizes = [16, 32], strides = [1, 1]} : vector<16x128xf32> to vector<16x32xf32>
    %345 = math.tanh %344 : vector<16x32xf32>
    %346 = vector.extract_strided_slice %331 {offsets = [0, 96], sizes = [16, 32], strides = [1, 1]} : vector<16x128xf32> to vector<16x32xf32>
    %347 = arith.negf %346 : vector<16x32xf32>
    %348 = math.exp %347 : vector<16x32xf32>
    %cst_72 = arith.constant 1.000000e+00 : f32
    %349 = vector.broadcast %cst_72 : f32 to vector<16x32xf32>
    %350 = arith.addf %349, %348 : vector<16x32xf32>
    %351 = arith.divf %349, %350 : vector<16x32xf32>
    %352 = arith.mulf %343, %322 : vector<16x32xf32>
    %353 = arith.mulf %337, %345 : vector<16x32xf32>
    %354 = arith.addf %352, %353 : vector<16x32xf32>
    %355 = math.tanh %354 : vector<16x32xf32>
    %356 = arith.mulf %351, %355 : vector<16x32xf32>
    %c8_i32_73 = arith.constant 8 : i32
    %357 = arith.muli %arg1, %c8_i32_73 : i32
    %358 = arith.addi %357, %c7_i32 : i32
    %359 = vector.broadcast %358 : i32 to vector<16x1xi32>
    %360 = arith.cmpi slt, %359, %12 : vector<16x1xi32>
    %361 = vector.shape_cast %360 : vector<16x1xi1> to vector<16x1xi1>
    %362 = vector.broadcast %361 : vector<16x1xi1> to vector<16x32xi1>
    %363 = arith.select %362, %356, %319 : vector<16x32xi1>, vector<16x32xf32>
    %364 = vector.shape_cast %360 : vector<16x1xi1> to vector<16x1xi1>
    %365 = vector.broadcast %364 : vector<16x1xi1> to vector<16x32xi1>
    %366 = arith.select %365, %354, %322 : vector<16x32xi1>, vector<16x32xf32>
    %c8_i32_74 = arith.constant 8 : i32
    %c0_75 = arith.constant 0 : index
    %c0_76 = arith.constant 0 : index
    %367 = vector.load %arg10[%c0_75, %c0_76] : memref<16x32xf32, #tpu.memory_space<vmem>>, vector<16x32xf32>
    tpu.vector_store %arg10[%c0_75, %c0_76], %363 {strides = array<i32>} : memref<16x32xf32, #tpu.memory_space<vmem>>, vector<16x32xf32>,
    %c0_77 = arith.constant 0 : index
    %c0_78 = arith.constant 0 : index
    %368 = vector.load %arg11[%c0_77, %c0_78] : memref<16x32xf32, #tpu.memory_space<vmem>>, vector<16x32xf32>
    tpu.vector_store %arg11[%c0_77, %c0_78], %366 {strides = array<i32>} : memref<16x32xf32, #tpu.memory_space<vmem>>, vector<16x32xf32>,
    %c0_i32_79 = arith.constant 0 : i32
    %369 = arith.cmpi eq, %arg1, %c0_i32_79 : i32
    %370 = arith.extui %369 : i1 to i32
    %c0_i32_80 = arith.constant 0 : i32
    %371 = arith.cmpi ne, %370, %c0_i32_80 : i32
    scf.if %371 {
      %372 = arith.truncf %363 : vector<16x32xf32> to vector<16x32xbf16>
      %c0_81 = arith.constant 0 : index
      %c0_82 = arith.constant 0 : index
      %373 = vector.load %arg7[%c0_81, %c0_82] : memref<64x16xbf16, #tpu.memory_space<vmem>>, vector<32x16xbf16>
      %cst_83 = arith.constant dense<0.000000e+00> : vector<16x16xf32>
      %374 = tpu.matmul %372, %373, %cst_83 {dimension_numbers = #tpu.dot_dimension_numbers<[1], [0], [0], [1], [0, 0, 1, 1], [], []>} : vector<16x32xbf16>, vector<32x16xbf16>, vector<16x16xf32> -> vector<16x16xf32>
      %375 = arith.truncf %366 : vector<16x32xf32> to vector<16x32xbf16>
      %c32 = arith.constant 32 : index
      %c0_84 = arith.constant 0 : index
      %376 = vector.load %arg7[%c32, %c0_84] : memref<64x16xbf16, #tpu.memory_space<vmem>>, vector<32x16xbf16>
      %cst_85 = arith.constant dense<0.000000e+00> : vector<16x16xf32>
      %377 = tpu.matmul %375, %376, %cst_85 {dimension_numbers = #tpu.dot_dimension_numbers<[1], [0], [0], [1], [0, 0, 1, 1], [], []>} : vector<16x32xbf16>, vector<32x16xbf16>, vector<16x16xf32> -> vector<16x16xf32>
      %378 = arith.addf %374, %377 : vector<16x16xf32>
      %c0_86 = arith.constant 0 : index
      %c0_87 = arith.constant 0 : index
      %379 = vector.load %arg8[%c0_86, %c0_87] : memref<1x16xf32, #tpu.memory_space<vmem>>, vector<1x16xf32>
      %380 = vector.broadcast %379 : vector<1x16xf32> to vector<16x16xf32>
      %381 = arith.addf %378, %380 : vector<16x16xf32>
      %c0_88 = arith.constant 0 : index
      %c0_89 = arith.constant 0 : index
      %382 = vector.load %arg9[%c0_88, %c0_89] : memref<16x16xf32, #tpu.memory_space<vmem>>, vector<16x16xf32>
      tpu.vector_store %arg9[%c0_88, %c0_89], %381 {strides = array<i32>} : memref<16x16xf32, #tpu.memory_space<vmem>>, vector<16x16xf32>,
    } else {
    }
    return
  }
  func.func @transform_0(%arg0: i32, %arg1: i32) -> (i32, i32, i32) {
    %c0_i32 = arith.constant 0 : i32
    %c0_i32_0 = arith.constant 0 : i32
    return %arg1, %arg0, %c0_i32 : i32, i32, i32
  }
  func.func @transform_1(%arg0: i32, %arg1: i32) -> (i32, i32) {
    %c0_i32 = arith.constant 0 : i32
    %c0_i32_0 = arith.constant 0 : i32
    return %arg0, %c0_i32 : i32, i32
  }
  func.func @transform_2(%arg0: i32, %arg1: i32) -> (i32, i32) {
    %c0_i32 = arith.constant 0 : i32
    %c0_i32_0 = arith.constant 0 : i32
    %c0_i32_1 = arith.constant 0 : i32
    return %c0_i32, %c0_i32_0 : i32, i32
  }
  func.func @transform_3(%arg0: i32, %arg1: i32) -> (i32, i32) {
    %c0_i32 = arith.constant 0 : i32
    %c0_i32_0 = arith.constant 0 : i32
    %c0_i32_1 = arith.constant 0 : i32
    return %c0_i32, %c0_i32_0 : i32, i32
  }
  func.func @transform_4(%arg0: i32, %arg1: i32) -> (i32, i32) {
    %c0_i32 = arith.constant 0 : i32
    %c0_i32_0 = arith.constant 0 : i32
    %c0_i32_1 = arith.constant 0 : i32
    return %c0_i32, %c0_i32_0 : i32, i32
  }
  func.func @transform_5(%arg0: i32, %arg1: i32) -> (i32, i32) {
    %c0_i32 = arith.constant 0 : i32
    %c0_i32_0 = arith.constant 0 : i32
    %c0_i32_1 = arith.constant 0 : i32
    return %c0_i32, %c0_i32_0 : i32, i32
  }
  func.func @transform_6(%arg0: i32, %arg1: i32) -> (i32, i32) {
    %c0_i32 = arith.constant 0 : i32
    %c0_i32_0 = arith.constant 0 : i32
    %c0_i32_1 = arith.constant 0 : i32
    return %c0_i32, %c0_i32_0 : i32, i32
  }
  func.func @transform_7(%arg0: i32, %arg1: i32) -> (i32, i32) {
    %c0_i32 = arith.constant 0 : i32
    %c0_i32_0 = arith.constant 0 : i32
    return %arg0, %c0_i32 : i32, i32
  }
}

</mosaic_0001>

<llo_original>
// kernel: tpu_custom_call.1
$region0: #{tpu_custom_call.1}
  #allocation0 [shape = 'u32[]', space=smem, size = 0x4, offset = 0x4, fixed_abs, tag = 'smem constant byte address 0x4 - core index']
  #allocation1 [shape = 'u32[72,128]{1,0:T(1,128)}', space=vmem, size = 0x9000, scoped, tag = 'internal scratch']
  #allocation2 [shape = 'f32[16,32]{1,0:T(8,128)}', space=vmem, size = 0x2000, scoped, tag = 'scratch operand']
  #allocation3 [shape = 'f32[16,32]{1,0:T(8,128)}', space=vmem, size = 0x2000, scoped, tag = 'scratch operand']
  #allocation4 [shape = 'bf16[8,16,128]{2,1,0:T(8,128)(2,1)}', space=vmem, size = 0x8000, scoped, tag = 'scratch operand']
  %s0 = inlined_call_operand.hbm [shape: bf16[8,16,16], index: 0, kind: input, shape index: {}]
  %s1 = inlined_call_operand.vmem [shape: s32[16,1], index: 1, kind: input, shape index: {}]
  %s2 = inlined_call_operand.vmem [shape: bf16[16,128], index: 2, kind: input, shape index: {}]
  %s3 = inlined_call_operand.vmem [shape: bf16[32,128], index: 3, kind: input, shape index: {}]
  %s4 = inlined_call_operand.vmem [shape: f32[1,128], index: 4, kind: input, shape index: {}]
  %s5 = inlined_call_operand.vmem [shape: bf16[64,16], index: 5, kind: input, shape index: {}]
  %s6 = inlined_call_operand.vmem [shape: f32[1,16], index: 6, kind: input, shape index: {}]
  %s7 = inlined_call_operand.hbm [shape: f32[16,16], index: 7, kind: output, shape index: {}]
  %s8 = sld [smem:[#allocation0]]
  $region50: #{tpu_custom_call.1} parent=0
    _
  %s10 = ssub.s32 1, %s8
  %s11 = scalar_select 0, %s10, %s8
  $region1: #{tpu_custom_call.1} parent=0
    #allocation5 [shape = 'u8[32768]{0}', space=vmem, size = 0x8000, scoped, tag = 'input window, operand 0, single buffered']
    #allocation6 [shape = 's32[1]{0}', space=sflag, size = 0x4, scoped, tag = 'scoped memory for tpu_custom_call.1']
    #allocation7 [shape = 's32[1]{0}', space=sflag, size = 0x4, scoped, tag = 'scoped memory for tpu_custom_call.1']
    #allocation8 [shape = 'u8[8192]{0}', space=vmem, size = 0x2000, scoped, tag = 'output window, operand 0, single buffered']
    %12 = vsyncpa [#allocation6], 0
    %13 = vsyncpa [#allocation7], 0
    // Predicated region
    $region2: #{tpu_custom_call.1} parent=1 // pred_check
      _
    $region3: #{tpu_custom_call.1} parent=1 // pred_check_branch
      %15 = sbr.rel (0) target = $region5
    $region4: #{tpu_custom_call.1} parent=1 // pred_region
      %17 = vsyncadd [#allocation6], 0
      %s18 = sshll.u32 %s0, 4
      %s19 = int_to_ptr.hbm [resolvable:$true] %s18
      %s20 = sshll.u32 [#allocation5], 4
      %s21 = int_to_ptr.vmem [resolvable:$true] %s20
      %26 = dma.hbm_to_vmem [thread:$0]  %s19, 1024, %s21, [#allocation6], 64, 64, 4
    $region5: #{tpu_custom_call.1} parent=1 // pred_fallthru
      _
    // Predicated region
    $region6: #{tpu_custom_call.1} parent=1 // pred_check
      _
    $region7: #{tpu_custom_call.1} parent=1 // pred_check_branch
      %28 = sbr.rel (0) target = $region9
    $region8: #{tpu_custom_call.1} parent=1 // pred_region
      _
    $region9: #{tpu_custom_call.1} parent=1 // pred_fallthru
      _
    // Predicated region
    $region10: #{tpu_custom_call.1} parent=1 // pred_check
      _
    $region11: #{tpu_custom_call.1} parent=1 // pred_check_branch
      %30 = sbr.rel (0) target = $region13
    $region12: #{tpu_custom_call.1} parent=1 // pred_region
      _
    $region13: #{tpu_custom_call.1} parent=1 // pred_fallthru
      _
    // Predicated region
    $region14: #{tpu_custom_call.1} parent=1 // pred_check
      _
    $region15: #{tpu_custom_call.1} parent=1 // pred_check_branch
      %32 = sbr.rel (0) target = $region17
    $region16: #{tpu_custom_call.1} parent=1 // pred_region
      _
    $region17: #{tpu_custom_call.1} parent=1 // pred_fallthru
      _
    // Predicated region
    $region18: #{tpu_custom_call.1} parent=1 // pred_check
      _
    $region19: #{tpu_custom_call.1} parent=1 // pred_check_branch
      %34 = sbr.rel (0) target = $region21
    $region20: #{tpu_custom_call.1} parent=1 // pred_region
      _
    $region21: #{tpu_custom_call.1} parent=1 // pred_fallthru
      _
    // Predicated region
    $region22: #{tpu_custom_call.1} parent=1 // pred_check
      _
    $region23: #{tpu_custom_call.1} parent=1 // pred_check_branch
      %36 = sbr.rel (0) target = $region25
    $region24: #{tpu_custom_call.1} parent=1 // pred_region
      _
    $region25: #{tpu_custom_call.1} parent=1 // pred_fallthru
      _
    // Predicated region
    $region26: #{tpu_custom_call.1} parent=1 // pred_check
      _
    $region27: #{tpu_custom_call.1} parent=1 // pred_check_branch
      %38 = sbr.rel (0) target = $region29
    $region28: #{tpu_custom_call.1} parent=1 // pred_region
      _
    $region29: #{tpu_custom_call.1} parent=1 // pred_fallthru
      _
    // Predicated region
    $region30: #{tpu_custom_call.1} parent=1 // pred_check
      _
    $region31: #{tpu_custom_call.1} parent=1 // pred_check_branch
      %40 = sbr.rel (0) target = $region33
    $region32: #{tpu_custom_call.1} parent=1 // pred_region
      %42 = dma.done [#allocation6], 1024
    $region33: #{tpu_custom_call.1} parent=1 // pred_fallthru
      _
    %p44 = scmp.eq.s32.totalorder 0, 0
    // Predicated region
    $region34: #{tpu_custom_call.1} parent=1 // pred_check
      %p45 = pneg %p44
    $region35: #{tpu_custom_call.1} parent=1 // pred_check_branch
      %47 = sbr.rel (%p45) target = $region37
    $region36: #{tpu_custom_call.1} parent=1 // pred_region
      %vm48 = vcmask 261120
      %49 = vst.msk [vmem:[#allocation2] sm:$0xff] %vm48, 0.0
      %50 = vst.msk [vmem:[#allocation2 + $0x8] sm:$0xff] %vm48, 0.0
      %51 = vst.msk [vmem:[#allocation3] sm:$0xff] %vm48, 0.0
      %52 = vst.msk [vmem:[#allocation3 + $0x8] sm:$0xff] %vm48, 0.0
    $region37: #{tpu_custom_call.1} parent=1 // pred_fallthru
      _
    %v53 = vld [vmem:[#allocation5] sm:$0xf]
    %v54 = vld [vmem:[#allocation5 + $0x4] sm:$0xf]
    %v55 = vld [vmem:[#allocation5 + $0x8] sm:$0xf]
    %v56 = vld [vmem:[#allocation5 + $0xc] sm:$0xf]
    %v57 = vld [vmem:[#allocation5 + $0x10] sm:$0xf]
    %v58 = vld [vmem:[#allocation5 + $0x14] sm:$0xf]
    %v59 = vld [vmem:[#allocation5 + $0x18] sm:$0xf]
    %v60 = vld [vmem:[#allocation5 + $0x1c] sm:$0xf]
    %v61 = vld [vmem:[#allocation5 + $0x20] sm:$0xf]
    %v62 = vld [vmem:[#allocation5 + $0x24] sm:$0xf]
    %v63 = vld [vmem:[#allocation5 + $0x28] sm:$0xf]
    %v64 = vld [vmem:[#allocation5 + $0x2c] sm:$0xf]
    %v65 = vld [vmem:[#allocation5 + $0x30] sm:$0xf]
    %v66 = vld [vmem:[#allocation5 + $0x34] sm:$0xf]
    %v67 = vld [vmem:[#allocation5 + $0x38] sm:$0xf]
    %v68 = vld [vmem:[#allocation5 + $0x3c] sm:$0xf]
    %v69 = vld [vmem:[%s2] sm:$0xf]
    %v70 = vld [vmem:[%s2 + $0x4] sm:$0xf]
    %v87 = vunpack.c.l.b16 %v53
    %v88 = vunpack.c.l.b16 %v54
    %v89 = vunpack.c.l.b16 %v55
    %v90 = vunpack.c.l.b16 %v56
    %v91 = vunpack.c.l.b16 %v57
    %v92 = vunpack.c.l.b16 %v58
    %v93 = vunpack.c.l.b16 %v59
    %v94 = vunpack.c.l.b16 %v60
    %v95 = vunpack.c.l.b16 %v61
    %v96 = vunpack.c.l.b16 %v62
    %v97 = vunpack.c.l.b16 %v63
    %v98 = vunpack.c.l.b16 %v64
    %v99 = vunpack.c.l.b16 %v65
    %v100 = vunpack.c.l.b16 %v66
    %v101 = vunpack.c.l.b16 %v67
    %v102 = vunpack.c.l.b16 %v68
    %v103 = vpack.c.b16 %v88, %v87
    %v104 = vpack.c.b16 %v90, %v89
    %v105 = vpack.c.b16 %v92, %v91
    %v106 = vpack.c.b16 %v94, %v93
    %v107 = vpack.c.b16 %v96, %v95
    %v108 = vpack.c.b16 %v98, %v97
    %v109 = vpack.c.b16 %v100, %v99
    %v110 = vpack.c.b16 %v102, %v101
    %v113 = vunpack.c.l.b16 %v69
    %v114 = vunpack.c.l.b16 %v70
    %v115 = vpack.c.b16 %v114, %v113
    %vm117 = vcmask 130048
    %v119 = vsel %vm117, %v103, 0
    %v122 = vsel %vm117, %v104, 0
    %v125 = vsel %vm117, %v105, 0
    %v128 = vsel %vm117, %v106, 0
    %v131 = vsel %vm117, %v107, 0
    %v134 = vsel %vm117, %v108, 0
    %v137 = vsel %vm117, %v109, 0
    %v140 = vsel %vm117, %v110, 0
    %142 = vmatpush.bf16.msra.mxu0 0
    %143 = vmatpush.bf16.msra.mxu0 0
    %144 = vmatpush.bf16.msra.mxu0 0
    %145 = vmatpush.bf16.msra.mxu0 0
    %146 = vmatpush.bf16.msra.mxu0 0
    %147 = vmatpush.bf16.msra.mxu0 0
    %148 = vmatpush.bf16.msra.mxu0 0
    %149 = vmatpush.bf16.msra.mxu0 %v115
    %150 = vmatmul.bf16.gmra.mxu0 %v119
    %v151 = vpop.f32.mrf.mxu0
    %v152 = vadd.f32 0.0, %v151
    %v153 = vpop.f32.mrf.mxu0
    %v154 = vadd.f32 0.0, %v153
    %155 = vmatmul.bf16.gmra.mxu0 %v122
    %v156 = vpop.f32.mrf.mxu0
    %v157 = vadd.f32 0.0, %v156
    %v158 = vpop.f32.mrf.mxu0
    %v159 = vadd.f32 0.0, %v158
    %160 = vmatmul.bf16.gmra.mxu0 %v125
    %v161 = vpop.f32.mrf.mxu0
    %v162 = vadd.f32 0.0, %v161
    %v163 = vpop.f32.mrf.mxu0
    %v164 = vadd.f32 0.0, %v163
    %165 = vmatmul.bf16.gmra.mxu0 %v128
    %v166 = vpop.f32.mrf.mxu0
    %v167 = vadd.f32 0.0, %v166
    %v168 = vpop.f32.mrf.mxu0
    %v169 = vadd.f32 0.0, %v168
    %170 = vmatmul.bf16.gmra.mxu0 %v131
    %v171 = vpop.f32.mrf.mxu0
    %v172 = vadd.f32 0.0, %v171
    %v173 = vpop.f32.mrf.mxu0
    %v174 = vadd.f32 0.0, %v173
    %175 = vmatmul.bf16.gmra.mxu0 %v134
    %v176 = vpop.f32.mrf.mxu0
    %v177 = vadd.f32 0.0, %v176
    %v178 = vpop.f32.mrf.mxu0
    %v179 = vadd.f32 0.0, %v178
    %180 = vmatmul.bf16.gmra.mxu0 %v137
    %v181 = vpop.f32.mrf.mxu0
    %v182 = vadd.f32 0.0, %v181
    %v183 = vpop.f32.mrf.mxu0
    %v184 = vadd.f32 0.0, %v183
    %185 = vmatmul.bf16.gmra.mxu0 %v140
    %v186 = vpop.f32.mrf.mxu0
    %v187 = vadd.f32 0.0, %v186
    %v188 = vpop.f32.mrf.mxu0
    %v189 = vadd.f32 0.0, %v188
    %190 = vdwg.mxu0
    %v191 = vpack.c.bf16 %v152, %v152
    %v192 = vpack.c.bf16 %v154, %v154
    %v193 = vpack.c.bf16 %v157, %v157
    %v194 = vpack.c.bf16 %v159, %v159
    %v195 = vpack.c.bf16 %v162, %v162
    %v196 = vpack.c.bf16 %v164, %v164
    %v197 = vpack.c.bf16 %v167, %v167
    %v198 = vpack.c.bf16 %v169, %v169
    %v199 = vpack.c.bf16 %v172, %v172
    %v200 = vpack.c.bf16 %v174, %v174
    %v201 = vpack.c.bf16 %v177, %v177
    %v202 = vpack.c.bf16 %v179, %v179
    %v203 = vpack.c.bf16 %v182, %v182
    %v204 = vpack.c.bf16 %v184, %v184
    %v205 = vpack.c.bf16 %v187, %v187
    %v206 = vpack.c.bf16 %v189, %v189
    %207 = vst [vmem:[#allocation4] sm:$0xf] %v191
    %208 = vst [vmem:[#allocation4 + $0x4] sm:$0xf] %v192
    %209 = vst [vmem:[#allocation4 + $0x8] sm:$0xf] %v193
    %210 = vst [vmem:[#allocation4 + $0xc] sm:$0xf] %v194
    %211 = vst [vmem:[#allocation4 + $0x10] sm:$0xf] %v195
    %212 = vst [vmem:[#allocation4 + $0x14] sm:$0xf] %v196
    %213 = vst [vmem:[#allocation4 + $0x18] sm:$0xf] %v197
    %214 = vst [vmem:[#allocation4 + $0x1c] sm:$0xf] %v198
    %215 = vst [vmem:[#allocation4 + $0x20] sm:$0xf] %v199
    %216 = vst [vmem:[#allocation4 + $0x24] sm:$0xf] %v200
    %217 = vst [vmem:[#allocation4 + $0x28] sm:$0xf] %v201
    %218 = vst [vmem:[#allocation4 + $0x2c] sm:$0xf] %v202
    %219 = vst [vmem:[#allocation4 + $0x30] sm:$0xf] %v203
    %220 = vst [vmem:[#allocation4 + $0x34] sm:$0xf] %v204
    %221 = vst [vmem:[#allocation4 + $0x38] sm:$0xf] %v205
    %222 = vst [vmem:[#allocation4 + $0x3c] sm:$0xf] %v206
    %v223 = vld [vmem:[%s3] sm:$0xf]
    %v224 = vld [vmem:[%s3 + $0x4] sm:$0xf]
    %v225 = vld [vmem:[%s3 + $0x8] sm:$0xf]
    %v226 = vld [vmem:[%s3 + $0xc] sm:$0xf]
    %v227 = vld [vmem:[%s4] sm:$0x1]
    %v228 = vld [vmem:[%s1] sm:$0xff]
    %v229 = vld [vmem:[%s1 + $0x8] sm:$0xff]
    %v230 = vld [vmem:[#allocation2] sm:$0xff]
    %v231 = vld [vmem:[#allocation2 + $0x8] sm:$0xff]
    %v232 = vld [vmem:[#allocation3] sm:$0xff]
    %v233 = vld [vmem:[#allocation3 + $0x8] sm:$0xff]
    %v234 = vld [vmem:[#allocation4] sm:$0xf]
    %v235 = vld [vmem:[#allocation4 + $0x4] sm:$0xf]
    %v236 = vunpack.c.l.bf16 %v234
    %v237 = vunpack.c.l.bf16 %v235
    %v239 = vperm.slane %v227, 0
    %v241 = vadd.f32 %v236, %v239
    %v242 = vadd.f32 %v237, %v239
    %v243 = vpack.c.bf16 %v231, %v230
    %v248 = vunpack.c.l.b16 %v223
    %v249 = vunpack.c.l.b16 %v224
    %v250 = vunpack.c.l.b16 %v225
    %v251 = vunpack.c.l.b16 %v226
    %v252 = vpack.c.b16 %v249, %v248
    %v253 = vpack.c.b16 %v251, %v250
    %vm256 = vcmask 261120
    %v258 = vsel %vm256, %v243, 0
    %260 = vmatpush.bf16.msra.mxu0 0
    %261 = vmatpush.bf16.msra.mxu0 0
    %262 = vmatpush.bf16.msra.mxu0 0
    %263 = vmatpush.bf16.msra.mxu0 0
    %264 = vmatpush.bf16.msra.mxu0 0
    %265 = vmatpush.bf16.msra.mxu0 0
    %266 = vmatpush.bf16.msra.mxu0 %v253
    %267 = vmatpush.bf16.msra.mxu0 %v252
    %268 = vmatmul.bf16.gmra.mxu0 %v258
    %v269 = vpop.f32.mrf.mxu0
    %v270 = vadd.f32 0.0, %v269
    %v271 = vpop.f32.mrf.mxu0
    %v272 = vadd.f32 0.0, %v271
    %273 = vdwg.mxu0
    %v274 = vadd.f32 %v241, %v270
    %v275 = vadd.f32 %v242, %v272
    %v276 = vxor.u32 %v274, 2147483648
    %v277 = vxor.u32 %v275, 2147483648
    %v278 = vmul.f32 %v276, 1.442695
    %v279 = vpow.pop %v278
    %v280 = vmul.f32 %v277, 1.442695
    %v281 = vpow.pop %v280
    %v282 = vadd.f32 %v279, 1.0
    %v283 = vadd.f32 %v281, 1.0
    %v284 = vrcp.pop %v282
    %v285 = vmul.f32 %v282, %v284
    %v286 = vsub.f32 1.0, %v285
    %v287 = vmul.f32 %v284, %v286
    %v288 = vadd.f32 %v284, %v287
    %vm289 = vweird.f32 %v282
    %vm290 = vweird.f32 %v284
    %vm291 = vmor %vm289, %vm290
    %v292 = vsel %vm291, %v284, %v288
    %v293 = vand.u32 2147483647, %v282
    %vm294 = vcmp.eq.f32.partialorder %v293, 8.507059e+37
    %v295 = vand.u32 %v282, 2147483648
    %v296 = vor.u32 1.1754944e-38, %v295
    %v297 = vsel %vm294, %v296, %v292
    %v298 = vmul.f32 1.0, %v297
    %v299 = vrcp.pop %v283
    %v300 = vmul.f32 %v283, %v299
    %v301 = vsub.f32 1.0, %v300
    %v302 = vmul.f32 %v299, %v301
    %v303 = vadd.f32 %v299, %v302
    %vm304 = vweird.f32 %v283
    %vm305 = vweird.f32 %v299
    %vm306 = vmor %vm304, %vm305
    %v307 = vsel %vm306, %v299, %v303
    %v308 = vand.u32 2147483647, %v283
    %vm309 = vcmp.eq.f32.partialorder %v308, 8.507059e+37
    %v310 = vand.u32 %v283, 2147483648
    %v311 = vor.u32 1.1754944e-38, %v310
    %v312 = vsel %vm309, %v311, %v307
    %v313 = vmul.f32 1.0, %v312
    %v314 = vtanh.pop %v274
    %v315 = vtanh.pop %v275
    %318 = vrot.lane.b32.xlu0 %v232, 32
    %v319 = vpop.permute.xlu0 %318
    %320 = vrot.lane.b32.xlu0 %v233, 32
    %v321 = vpop.permute.xlu0 %320
    %v324 = vmul.f32 %v298, %v319
    %v325 = vmul.f32 %v313, %v321
    %328 = vrot.lane.b32.xlu0 %v314, 64
    %v329 = vpop.permute.xlu0 %328
    %330 = vrot.lane.b32.xlu0 %v315, 64
    %v331 = vpop.permute.xlu0 %330
    %v334 = vmul.f32 %v298, %v329
    %v335 = vmul.f32 %v313, %v331
    %338 = vrot.lane.b32.xlu0 %v334, 32
    %v339 = vpop.permute.xlu0 %338
    %340 = vrot.lane.b32.xlu0 %v335, 32
    %v341 = vpop.permute.xlu0 %340
    %v344 = vadd.f32 %v324, %v339
    %v345 = vadd.f32 %v325, %v341
    %v346 = vtanh.pop %v344
    %v347 = vtanh.pop %v345
    %350 = vrot.lane.b32.xlu0 %v346, 64
    %v351 = vpop.permute.xlu0 %350
    %352 = vrot.lane.b32.xlu0 %v347, 64
    %v353 = vpop.permute.xlu0 %352
    %v356 = vmul.f32 %v298, %v351
    %v357 = vmul.f32 %v313, %v353
    %s358 = smul.u32 0, 8
    %v359 = vstv %s358
    %vm360 = vcmp.lt.s32.totalorder %v359, %v228
    %vm361 = vcmp.lt.s32.totalorder %v359, %v229
    %v362 = vsel %vm360, 1, 0
    %v363 = vsel %vm361, 1, 0
    %364 = vset.pattern.permute.xlu0 0
    %365 = vperm.xlu0 %364, %v362
    %v366 = vpop.permute.xlu0 %365
    %367 = vset.pattern.permute.xlu0 0
    %368 = vperm.xlu0 %367, %v363
    %v369 = vpop.permute.xlu0 %368
    %vm370 = vcmp.eq.s32.totalorder %v366, 1
    %vm371 = vcmp.eq.s32.totalorder %v369, 1
    %374 = vrot.lane.b32.xlu0 %v230, 96
    %v375 = vpop.permute.xlu0 %374
    %376 = vrot.lane.b32.xlu0 %v231, 96
    %v377 = vpop.permute.xlu0 %376
    %v380 = vsel %vm370, %v356, %v375
    %v381 = vsel %vm371, %v357, %v377
    %v382 = vsel %vm370, %v344, %v319
    %v383 = vsel %vm371, %v345, %v321
    %s384 = scalar_lea.vmem [#allocation4], 8
    %v385 = vld [vmem:[%s384] sm:$0xf]
    %v386 = vld [vmem:[%s384 + $0x4] sm:$0xf]
    %v387 = vunpack.c.l.bf16 %v385
    %v388 = vunpack.c.l.bf16 %v386
    %v389 = vadd.f32 %v387, %v239
    %v390 = vadd.f32 %v388, %v239
    %v391 = vpack.c.bf16 %v381, %v380
    %393 = vrot.lane.b32.xlu0 %v391, 32
    %v394 = vpop.permute.xlu0 %393
    %v396 = vsel %vm256, %v394, 0
    %398 = vmatpush.bf16.msra.mxu0 0
    %399 = vmatpush.bf16.msra.mxu0 0
    %400 = vmatpush.bf16.msra.mxu0 0
    %401 = vmatpush.bf16.msra.mxu0 0
    %402 = vmatpush.bf16.msra.mxu0 0
    %403 = vmatpush.bf16.msra.mxu0 0
    %404 = vmatpush.bf16.msra.mxu0 %v253
    %405 = vmatpush.bf16.msra.mxu0 %v252
    %406 = vmatmul.bf16.gmra.mxu0 %v396
    %v407 = vpop.f32.mrf.mxu0
    %v408 = vadd.f32 0.0, %v407
    %v409 = vpop.f32.mrf.mxu0
    %v410 = vadd.f32 0.0, %v409
    %411 = vdwg.mxu0
    %v412 = vadd.f32 %v389, %v408
    %v413 = vadd.f32 %v390, %v410
    %v414 = vxor.u32 %v412, 2147483648
    %v415 = vxor.u32 %v413, 2147483648
    %v416 = vmul.f32 %v414, 1.442695
    %v417 = vpow.pop %v416
    %v418 = vmul.f32 %v415, 1.442695
    %v419 = vpow.pop %v418
    %v420 = vadd.f32 %v417, 1.0
    %v421 = vadd.f32 %v419, 1.0
    %v422 = vrcp.pop %v420
    %v423 = vmul.f32 %v420, %v422
    %v424 = vsub.f32 1.0, %v423
    %v425 = vmul.f32 %v422, %v424
    %v426 = vadd.f32 %v422, %v425
    %vm427 = vweird.f32 %v420
    %vm428 = vweird.f32 %v422
    %vm429 = vmor %vm427, %vm428
    %v430 = vsel %vm429, %v422, %v426
    %v431 = vand.u32 2147483647, %v420
    %vm432 = vcmp.eq.f32.partialorder %v431, 8.507059e+37
    %v433 = vand.u32 %v420, 2147483648
    %v434 = vor.u32 1.1754944e-38, %v433
    %v435 = vsel %vm432, %v434, %v430
    %v436 = vmul.f32 1.0, %v435
    %v437 = vrcp.pop %v421
    %v438 = vmul.f32 %v421, %v437
    %v439 = vsub.f32 1.0, %v438
    %v440 = vmul.f32 %v437, %v439
    %v441 = vadd.f32 %v437, %v440
    %vm442 = vweird.f32 %v421
    %vm443 = vweird.f32 %v437
    %vm444 = vmor %vm442, %vm443
    %v445 = vsel %vm444, %v437, %v441
    %v446 = vand.u32 2147483647, %v421
    %vm447 = vcmp.eq.f32.partialorder %v446, 8.507059e+37
    %v448 = vand.u32 %v421, 2147483648
    %v449 = vor.u32 1.1754944e-38, %v448
    %v450 = vsel %vm447, %v449, %v445
    %v451 = vmul.f32 1.0, %v450
    %v452 = vtanh.pop %v412
    %v453 = vtanh.pop %v413
    %v454 = vmul.f32 %v436, %v382
    %v455 = vmul.f32 %v451, %v383
    %458 = vrot.lane.b32.xlu0 %v452, 64
    %v459 = vpop.permute.xlu0 %458
    %460 = vrot.lane.b32.xlu0 %v453, 64
    %v461 = vpop.permute.xlu0 %460
    %v464 = vmul.f32 %v436, %v459
    %v465 = vmul.f32 %v451, %v461
    %468 = vrot.lane.b32.xlu0 %v464, 32
    %v469 = vpop.permute.xlu0 %468
    %470 = vrot.lane.b32.xlu0 %v465, 32
    %v471 = vpop.permute.xlu0 %470
    %v474 = vadd.f32 %v454, %v469
    %v475 = vadd.f32 %v455, %v471
    %v476 = vtanh.pop %v474
    %v477 = vtanh.pop %v475
    %480 = vrot.lane.b32.xlu0 %v476, 64
    %v481 = vpop.permute.xlu0 %480
    %482 = vrot.lane.b32.xlu0 %v477, 64
    %v483 = vpop.permute.xlu0 %482
    %v486 = vmul.f32 %v436, %v481
    %v487 = vmul.f32 %v451, %v483
    %s488 = sadd.s32 %s358, 1
    %v489 = vstv %s488
    %vm490 = vcmp.lt.s32.totalorder %v489, %v228
    %vm491 = vcmp.lt.s32.totalorder %v489, %v229
    %v492 = vsel %vm490, 1, 0
    %v493 = vsel %vm491, 1, 0
    %494 = vset.pattern.permute.xlu0 0
    %495 = vperm.xlu0 %494, %v492
    %v496 = vpop.permute.xlu0 %495
    %497 = vset.pattern.permute.xlu0 0
    %498 = vperm.xlu0 %497, %v493
    %v499 = vpop.permute.xlu0 %498
    %vm500 = vcmp.eq.s32.totalorder %v496, 1
    %vm501 = vcmp.eq.s32.totalorder %v499, 1
    %v502 = vsel %vm500, %v486, %v380
    %v503 = vsel %vm501, %v487, %v381
    %v504 = vsel %vm500, %v474, %v382
    %v505 = vsel %vm501, %v475, %v383
    %s506 = scalar_lea.vmem [#allocation4], 16
    %v507 = vld [vmem:[%s506] sm:$0xf]
    %v508 = vld [vmem:[%s506 + $0x4] sm:$0xf]
    %v509 = vunpack.c.l.bf16 %v507
    %v510 = vunpack.c.l.bf16 %v508
    %v511 = vadd.f32 %v509, %v239
    %v512 = vadd.f32 %v510, %v239
    %v513 = vpack.c.bf16 %v503, %v502
    %515 = vrot.lane.b32.xlu0 %v513, 32
    %v516 = vpop.permute.xlu0 %515
    %v518 = vsel %vm256, %v516, 0
    %520 = vmatpush.bf16.msra.mxu0 0
    %521 = vmatpush.bf16.msra.mxu0 0
    %522 = vmatpush.bf16.msra.mxu0 0
    %523 = vmatpush.bf16.msra.mxu0 0
    %524 = vmatpush.bf16.msra.mxu0 0
    %525 = vmatpush.bf16.msra.mxu0 0
    %526 = vmatpush.bf16.msra.mxu0 %v253
    %527 = vmatpush.bf16.msra.mxu0 %v252
    %528 = vmatmul.bf16.gmra.mxu0 %v518
    %v529 = vpop.f32.mrf.mxu0
    %v530 = vadd.f32 0.0, %v529
    %v531 = vpop.f32.mrf.mxu0
    %v532 = vadd.f32 0.0, %v531
    %533 = vdwg.mxu0
    %v534 = vadd.f32 %v511, %v530
    %v535 = vadd.f32 %v512, %v532
    %v536 = vxor.u32 %v534, 2147483648
    %v537 = vxor.u32 %v535, 2147483648
    %v538 = vmul.f32 %v536, 1.442695
    %v539 = vpow.pop %v538
    %v540 = vmul.f32 %v537, 1.442695
    %v541 = vpow.pop %v540
    %v542 = vadd.f32 %v539, 1.0
    %v543 = vadd.f32 %v541, 1.0
    %v544 = vrcp.pop %v542
    %v545 = vmul.f32 %v542, %v544
    %v546 = vsub.f32 1.0, %v545
    %v547 = vmul.f32 %v544, %v546
    %v548 = vadd.f32 %v544, %v547
    %vm549 = vweird.f32 %v542
    %vm550 = vweird.f32 %v544
    %vm551 = vmor %vm549, %vm550
    %v552 = vsel %vm551, %v544, %v548
    %v553 = vand.u32 2147483647, %v542
    %vm554 = vcmp.eq.f32.partialorder %v553, 8.507059e+37
    %v555 = vand.u32 %v542, 2147483648
    %v556 = vor.u32 1.1754944e-38, %v555
    %v557 = vsel %vm554, %v556, %v552
    %v558 = vmul.f32 1.0, %v557
    %v559 = vrcp.pop %v543
    %v560 = vmul.f32 %v543, %v559
    %v561 = vsub.f32 1.0, %v560
    %v562 = vmul.f32 %v559, %v561
    %v563 = vadd.f32 %v559, %v562
    %vm564 = vweird.f32 %v543
    %vm565 = vweird.f32 %v559
    %vm566 = vmor %vm564, %vm565
    %v567 = vsel %vm566, %v559, %v563
    %v568 = vand.u32 2147483647, %v543
    %vm569 = vcmp.eq.f32.partialorder %v568, 8.507059e+37
    %v570 = vand.u32 %v543, 2147483648
    %v571 = vor.u32 1.1754944e-38, %v570
    %v572 = vsel %vm569, %v571, %v567
    %v573 = vmul.f32 1.0, %v572
    %v574 = vtanh.pop %v534
    %v575 = vtanh.pop %v535
    %v576 = vmul.f32 %v558, %v504
    %v577 = vmul.f32 %v573, %v505
    %580 = vrot.lane.b32.xlu0 %v574, 64
    %v581 = vpop.permute.xlu0 %580
    %582 = vrot.lane.b32.xlu0 %v575, 64
    %v583 = vpop.permute.xlu0 %582
    %v586 = vmul.f32 %v558, %v581
    %v587 = vmul.f32 %v573, %v583
    %590 = vrot.lane.b32.xlu0 %v586, 32
    %v591 = vpop.permute.xlu0 %590
    %592 = vrot.lane.b32.xlu0 %v587, 32
    %v593 = vpop.permute.xlu0 %592
    %v596 = vadd.f32 %v576, %v591
    %v597 = vadd.f32 %v577, %v593
    %v598 = vtanh.pop %v596
    %v599 = vtanh.pop %v597
    %602 = vrot.lane.b32.xlu0 %v598, 64
    %v603 = vpop.permute.xlu0 %602
    %604 = vrot.lane.b32.xlu0 %v599, 64
    %v605 = vpop.permute.xlu0 %604
    %v608 = vmul.f32 %v558, %v603
    %v609 = vmul.f32 %v573, %v605
    %s610 = sadd.s32 %s358, 2
    %v611 = vstv %s610
    %vm612 = vcmp.lt.s32.totalorder %v611, %v228
    %vm613 = vcmp.lt.s32.totalorder %v611, %v229
    %v614 = vsel %vm612, 1, 0
    %v615 = vsel %vm613, 1, 0
    %616 = vset.pattern.permute.xlu0 0
    %617 = vperm.xlu0 %616, %v614
    %v618 = vpop.permute.xlu0 %617
    %619 = vset.pattern.permute.xlu0 0
    %620 = vperm.xlu0 %619, %v615
    %v621 = vpop.permute.xlu0 %620
    %vm622 = vcmp.eq.s32.totalorder %v618, 1
    %vm623 = vcmp.eq.s32.totalorder %v621, 1
    %v624 = vsel %vm622, %v608, %v502
    %v625 = vsel %vm623, %v609, %v503
    %v626 = vsel %vm622, %v596, %v504
    %v627 = vsel %vm623, %v597, %v505
    %s628 = scalar_lea.vmem [#allocation4], 24
    %v629 = vld [vmem:[%s628] sm:$0xf]
    %v630 = vld [vmem:[%s628 + $0x4] sm:$0xf]
    %v631 = vunpack.c.l.bf16 %v629
    %v632 = vunpack.c.l.bf16 %v630
    %v633 = vadd.f32 %v631, %v239
    %v634 = vadd.f32 %v632, %v239
    %v635 = vpack.c.bf16 %v625, %v624
    %637 = vrot.lane.b32.xlu0 %v635, 32
    %v638 = vpop.permute.xlu0 %637
    %v640 = vsel %vm256, %v638, 0
    %642 = vmatpush.bf16.msra.mxu0 0
    %643 = vmatpush.bf16.msra.mxu0 0
    %644 = vmatpush.bf16.msra.mxu0 0
    %645 = vmatpush.bf16.msra.mxu0 0
    %646 = vmatpush.bf16.msra.mxu0 0
    %647 = vmatpush.bf16.msra.mxu0 0
    %648 = vmatpush.bf16.msra.mxu0 %v253
    %649 = vmatpush.bf16.msra.mxu0 %v252
    %650 = vmatmul.bf16.gmra.mxu0 %v640
    %v651 = vpop.f32.mrf.mxu0
    %v652 = vadd.f32 0.0, %v651
    %v653 = vpop.f32.mrf.mxu0
    %v654 = vadd.f32 0.0, %v653
    %655 = vdwg.mxu0
    %v656 = vadd.f32 %v633, %v652
    %v657 = vadd.f32 %v634, %v654
    %v658 = vxor.u32 %v656, 2147483648
    %v659 = vxor.u32 %v657, 2147483648
    %v660 = vmul.f32 %v658, 1.442695
    %v661 = vpow.pop %v660
    %v662 = vmul.f32 %v659, 1.442695
    %v663 = vpow.pop %v662
    %v664 = vadd.f32 %v661, 1.0
    %v665 = vadd.f32 %v663, 1.0
    %v666 = vrcp.pop %v664
    %v667 = vmul.f32 %v664, %v666
    %v668 = vsub.f32 1.0, %v667
    %v669 = vmul.f32 %v666, %v668
    %v670 = vadd.f32 %v666, %v669
    %vm671 = vweird.f32 %v664
    %vm672 = vweird.f32 %v666
    %vm673 = vmor %vm671, %vm672
    %v674 = vsel %vm673, %v666, %v670
    %v675 = vand.u32 2147483647, %v664
    %vm676 = vcmp.eq.f32.partialorder %v675, 8.507059e+37
    %v677 = vand.u32 %v664, 2147483648
    %v678 = vor.u32 1.1754944e-38, %v677
    %v679 = vsel %vm676, %v678, %v674
    %v680 = vmul.f32 1.0, %v679
    %v681 = vrcp.pop %v665
    %v682 = vmul.f32 %v665, %v681
    %v683 = vsub.f32 1.0, %v682
    %v684 = vmul.f32 %v681, %v683
    %v685 = vadd.f32 %v681, %v684
    %vm686 = vweird.f32 %v665
    %vm687 = vweird.f32 %v681
    %vm688 = vmor %vm686, %vm687
    %v689 = vsel %vm688, %v681, %v685
    %v690 = vand.u32 2147483647, %v665
    %vm691 = vcmp.eq.f32.partialorder %v690, 8.507059e+37
    %v692 = vand.u32 %v665, 2147483648
    %v693 = vor.u32 1.1754944e-38, %v692
    %v694 = vsel %vm691, %v693, %v689
    %v695 = vmul.f32 1.0, %v694
    %v696 = vtanh.pop %v656
    %v697 = vtanh.pop %v657
    %v698 = vmul.f32 %v680, %v626
    %v699 = vmul.f32 %v695, %v627
    %702 = vrot.lane.b32.xlu0 %v696, 64
    %v703 = vpop.permute.xlu0 %702
    %704 = vrot.lane.b32.xlu0 %v697, 64
    %v705 = vpop.permute.xlu0 %704
    %v708 = vmul.f32 %v680, %v703
    %v709 = vmul.f32 %v695, %v705
    %712 = vrot.lane.b32.xlu0 %v708, 32
    %v713 = vpop.permute.xlu0 %712
    %714 = vrot.lane.b32.xlu0 %v709, 32
    %v715 = vpop.permute.xlu0 %714
    %v718 = vadd.f32 %v698, %v713
    %v719 = vadd.f32 %v699, %v715
    %v720 = vtanh.pop %v718
    %v721 = vtanh.pop %v719
    %724 = vrot.lane.b32.xlu0 %v720, 64
    %v725 = vpop.permute.xlu0 %724
    %726 = vrot.lane.b32.xlu0 %v721, 64
    %v727 = vpop.permute.xlu0 %726
    %v730 = vmul.f32 %v680, %v725
    %v731 = vmul.f32 %v695, %v727
    %s732 = sadd.s32 %s358, 3
    %v733 = vstv %s732
    %vm734 = vcmp.lt.s32.totalorder %v733, %v228
    %vm735 = vcmp.lt.s32.totalorder %v733, %v229
    %v736 = vsel %vm734, 1, 0
    %v737 = vsel %vm735, 1, 0
    %738 = vset.pattern.permute.xlu0 0
    %739 = vperm.xlu0 %738, %v736
    %v740 = vpop.permute.xlu0 %739
    %741 = vset.pattern.permute.xlu0 0
    %742 = vperm.xlu0 %741, %v737
    %v743 = vpop.permute.xlu0 %742
    %vm744 = vcmp.eq.s32.totalorder %v740, 1
    %vm745 = vcmp.eq.s32.totalorder %v743, 1
    %v746 = vsel %vm744, %v730, %v624
    %v747 = vsel %vm745, %v731, %v625
    %v748 = vsel %vm744, %v718, %v626
    %v749 = vsel %vm745, %v719, %v627
    %s750 = scalar_lea.vmem [#allocation4], 32
    %v751 = vld [vmem:[%s750] sm:$0xf]
    %v752 = vld [vmem:[%s750 + $0x4] sm:$0xf]
    %v753 = vunpack.c.l.bf16 %v751
    %v754 = vunpack.c.l.bf16 %v752
    %v755 = vadd.f32 %v753, %v239
    %v756 = vadd.f32 %v754, %v239
    %v757 = vpack.c.bf16 %v747, %v746
    %759 = vrot.lane.b32.xlu0 %v757, 32
    %v760 = vpop.permute.xlu0 %759
    %v762 = vsel %vm256, %v760, 0
    %764 = vmatpush.bf16.msra.mxu0 0
    %765 = vmatpush.bf16.msra.mxu0 0
    %766 = vmatpush.bf16.msra.mxu0 0
    %767 = vmatpush.bf16.msra.mxu0 0
    %768 = vmatpush.bf16.msra.mxu0 0
    %769 = vmatpush.bf16.msra.mxu0 0
    %770 = vmatpush.bf16.msra.mxu0 %v253
    %771 = vmatpush.bf16.msra.mxu0 %v252
    %772 = vmatmul.bf16.gmra.mxu0 %v762
    %v773 = vpop.f32.mrf.mxu0
    %v774 = vadd.f32 0.0, %v773
    %v775 = vpop.f32.mrf.mxu0
    %v776 = vadd.f32 0.0, %v775
    %777 = vdwg.mxu0
    %v778 = vadd.f32 %v755, %v774
    %v779 = vadd.f32 %v756, %v776
    %v780 = vxor.u32 %v778, 2147483648
    %v781 = vxor.u32 %v779, 2147483648
    %v782 = vmul.f32 %v780, 1.442695
    %v783 = vpow.pop %v782
    %v784 = vmul.f32 %v781, 1.442695
    %v785 = vpow.pop %v784
    %v786 = vadd.f32 %v783, 1.0
    %v787 = vadd.f32 %v785, 1.0
    %v788 = vrcp.pop %v786
    %v789 = vmul.f32 %v786, %v788
    %v790 = vsub.f32 1.0, %v789
    %v791 = vmul.f32 %v788, %v790
    %v792 = vadd.f32 %v788, %v791
    %vm793 = vweird.f32 %v786
    %vm794 = vweird.f32 %v788
    %vm795 = vmor %vm793, %vm794
    %v796 = vsel %vm795, %v788, %v792
    %v797 = vand.u32 2147483647, %v786
    %vm798 = vcmp.eq.f32.partialorder %v797, 8.507059e+37
    %v799 = vand.u32 %v786, 2147483648
    %v800 = vor.u32 1.1754944e-38, %v799
    %v801 = vsel %vm798, %v800, %v796
    %v802 = vmul.f32 1.0, %v801
    %v803 = vrcp.pop %v787
    %v804 = vmul.f32 %v787, %v803
    %v805 = vsub.f32 1.0, %v804
    %v806 = vmul.f32 %v803, %v805
    %v807 = vadd.f32 %v803, %v806
    %vm808 = vweird.f32 %v787
    %vm809 = vweird.f32 %v803
    %vm810 = vmor %vm808, %vm809
    %v811 = vsel %vm810, %v803, %v807
    %v812 = vand.u32 2147483647, %v787
    %vm813 = vcmp.eq.f32.partialorder %v812, 8.507059e+37
    %v814 = vand.u32 %v787, 2147483648
    %v815 = vor.u32 1.1754944e-38, %v814
    %v816 = vsel %vm813, %v815, %v811
    %v817 = vmul.f32 1.0, %v816
    %v818 = vtanh.pop %v778
    %v819 = vtanh.pop %v779
    %v820 = vmul.f32 %v802, %v748
    %v821 = vmul.f32 %v817, %v749
    %824 = vrot.lane.b32.xlu0 %v818, 64
    %v825 = vpop.permute.xlu0 %824
    %826 = vrot.lane.b32.xlu0 %v819, 64
    %v827 = vpop.permute.xlu0 %826
    %v830 = vmul.f32 %v802, %v825
    %v831 = vmul.f32 %v817, %v827
    %834 = vrot.lane.b32.xlu0 %v830, 32
    %v835 = vpop.permute.xlu0 %834
    %836 = vrot.lane.b32.xlu0 %v831, 32
    %v837 = vpop.permute.xlu0 %836
    %v840 = vadd.f32 %v820, %v835
    %v841 = vadd.f32 %v821, %v837
    %v842 = vtanh.pop %v840
    %v843 = vtanh.pop %v841
    %846 = vrot.lane.b32.xlu0 %v842, 64
    %v847 = vpop.permute.xlu0 %846
    %848 = vrot.lane.b32.xlu0 %v843, 64
    %v849 = vpop.permute.xlu0 %848
    %v852 = vmul.f32 %v802, %v847
    %v853 = vmul.f32 %v817, %v849
    %s854 = sadd.s32 %s358, 4
    %v855 = vstv %s854
    %vm856 = vcmp.lt.s32.totalorder %v855, %v228
    %vm857 = vcmp.lt.s32.totalorder %v855, %v229
    %v858 = vsel %vm856, 1, 0
    %v859 = vsel %vm857, 1, 0
    %860 = vset.pattern.permute.xlu0 0
    %861 = vperm.xlu0 %860, %v858
    %v862 = vpop.permute.xlu0 %861
    %863 = vset.pattern.permute.xlu0 0
    %864 = vperm.xlu0 %863, %v859
    %v865 = vpop.permute.xlu0 %864
    %vm866 = vcmp.eq.s32.totalorder %v862, 1
    %vm867 = vcmp.eq.s32.totalorder %v865, 1
    %v868 = vsel %vm866, %v852, %v746
    %v869 = vsel %vm867, %v853, %v747
    %v870 = vsel %vm866, %v840, %v748
    %v871 = vsel %vm867, %v841, %v749
    %s872 = scalar_lea.vmem [#allocation4], 40
    %v873 = vld [vmem:[%s872] sm:$0xf]
    %v874 = vld [vmem:[%s872 + $0x4] sm:$0xf]
    %v875 = vunpack.c.l.bf16 %v873
    %v876 = vunpack.c.l.bf16 %v874
    %v877 = vadd.f32 %v875, %v239
    %v878 = vadd.f32 %v876, %v239
    %v879 = vpack.c.bf16 %v869, %v868
    %881 = vrot.lane.b32.xlu0 %v879, 32
    %v882 = vpop.permute.xlu0 %881
    %v884 = vsel %vm256, %v882, 0
    %886 = vmatpush.bf16.msra.mxu0 0
    %887 = vmatpush.bf16.msra.mxu0 0
    %888 = vmatpush.bf16.msra.mxu0 0
    %889 = vmatpush.bf16.msra.mxu0 0
    %890 = vmatpush.bf16.msra.mxu0 0
    %891 = vmatpush.bf16.msra.mxu0 0
    %892 = vmatpush.bf16.msra.mxu0 %v253
    %893 = vmatpush.bf16.msra.mxu0 %v252
    %894 = vmatmul.bf16.gmra.mxu0 %v884
    %v895 = vpop.f32.mrf.mxu0
    %v896 = vadd.f32 0.0, %v895
    %v897 = vpop.f32.mrf.mxu0
    %v898 = vadd.f32 0.0, %v897
    %899 = vdwg.mxu0
    %v900 = vadd.f32 %v877, %v896
    %v901 = vadd.f32 %v878, %v898
    %v902 = vxor.u32 %v900, 2147483648
    %v903 = vxor.u32 %v901, 2147483648
    %v904 = vmul.f32 %v902, 1.442695
    %v905 = vpow.pop %v904
    %v906 = vmul.f32 %v903, 1.442695
    %v907 = vpow.pop %v906
    %v908 = vadd.f32 %v905, 1.0
    %v909 = vadd.f32 %v907, 1.0
    %v910 = vrcp.pop %v908
    %v911 = vmul.f32 %v908, %v910
    %v912 = vsub.f32 1.0, %v911
    %v913 = vmul.f32 %v910, %v912
    %v914 = vadd.f32 %v910, %v913
    %vm915 = vweird.f32 %v908
    %vm916 = vweird.f32 %v910
    %vm917 = vmor %vm915, %vm916
    %v918 = vsel %vm917, %v910, %v914
    %v919 = vand.u32 2147483647, %v908
    %vm920 = vcmp.eq.f32.partialorder %v919, 8.507059e+37
    %v921 = vand.u32 %v908, 2147483648
    %v922 = vor.u32 1.1754944e-38, %v921
    %v923 = vsel %vm920, %v922, %v918
    %v924 = vmul.f32 1.0, %v923
    %v925 = vrcp.pop %v909
    %v926 = vmul.f32 %v909, %v925
    %v927 = vsub.f32 1.0, %v926
    %v928 = vmul.f32 %v925, %v927
    %v929 = vadd.f32 %v925, %v928
    %vm930 = vweird.f32 %v909
    %vm931 = vweird.f32 %v925
    %vm932 = vmor %vm930, %vm931
    %v933 = vsel %vm932, %v925, %v929
    %v934 = vand.u32 2147483647, %v909
    %vm935 = vcmp.eq.f32.partialorder %v934, 8.507059e+37
    %v936 = vand.u32 %v909, 2147483648
    %v937 = vor.u32 1.1754944e-38, %v936
    %v938 = vsel %vm935, %v937, %v933
    %v939 = vmul.f32 1.0, %v938
    %v940 = vtanh.pop %v900
    %v941 = vtanh.pop %v901
    %v942 = vmul.f32 %v924, %v870
    %v943 = vmul.f32 %v939, %v871
    %946 = vrot.lane.b32.xlu0 %v940, 64
    %v947 = vpop.permute.xlu0 %946
    %948 = vrot.lane.b32.xlu0 %v941, 64
    %v949 = vpop.permute.xlu0 %948
    %v952 = vmul.f32 %v924, %v947
    %v953 = vmul.f32 %v939, %v949
    %956 = vrot.lane.b32.xlu0 %v952, 32
    %v957 = vpop.permute.xlu0 %956
    %958 = vrot.lane.b32.xlu0 %v953, 32
    %v959 = vpop.permute.xlu0 %958
    %v962 = vadd.f32 %v942, %v957
    %v963 = vadd.f32 %v943, %v959
    %v964 = vtanh.pop %v962
    %v965 = vtanh.pop %v963
    %968 = vrot.lane.b32.xlu0 %v964, 64
    %v969 = vpop.permute.xlu0 %968
    %970 = vrot.lane.b32.xlu0 %v965, 64
    %v971 = vpop.permute.xlu0 %970
    %v974 = vmul.f32 %v924, %v969
    %v975 = vmul.f32 %v939, %v971
    %s976 = sadd.s32 %s358, 5
    %v977 = vstv %s976
    %vm978 = vcmp.lt.s32.totalorder %v977, %v228
    %vm979 = vcmp.lt.s32.totalorder %v977, %v229
    %v980 = vsel %vm978, 1, 0
    %v981 = vsel %vm979, 1, 0
    %982 = vset.pattern.permute.xlu0 0
    %983 = vperm.xlu0 %982, %v980
    %v984 = vpop.permute.xlu0 %983
    %985 = vset.pattern.permute.xlu0 0
    %986 = vperm.xlu0 %985, %v981
    %v987 = vpop.permute.xlu0 %986
    %vm988 = vcmp.eq.s32.totalorder %v984, 1
    %vm989 = vcmp.eq.s32.totalorder %v987, 1
    %v990 = vsel %vm988, %v974, %v868
    %v991 = vsel %vm989, %v975, %v869
    %v992 = vsel %vm988, %v962, %v870
    %v993 = vsel %vm989, %v963, %v871
    %s994 = scalar_lea.vmem [#allocation4], 48
    %v995 = vld [vmem:[%s994] sm:$0xf]
    %v996 = vld [vmem:[%s994 + $0x4] sm:$0xf]
    %v997 = vunpack.c.l.bf16 %v995
    %v998 = vunpack.c.l.bf16 %v996
    %v999 = vadd.f32 %v997, %v239
    %v1000 = vadd.f32 %v998, %v239
    %v1001 = vpack.c.bf16 %v991, %v990
    %1003 = vrot.lane.b32.xlu0 %v1001, 32
    %v1004 = vpop.permute.xlu0 %1003
    %v1006 = vsel %vm256, %v1004, 0
    %1008 = vmatpush.bf16.msra.mxu0 0
    %1009 = vmatpush.bf16.msra.mxu0 0
    %1010 = vmatpush.bf16.msra.mxu0 0
    %1011 = vmatpush.bf16.msra.mxu0 0
    %1012 = vmatpush.bf16.msra.mxu0 0
    %1013 = vmatpush.bf16.msra.mxu0 0
    %1014 = vmatpush.bf16.msra.mxu0 %v253
    %1015 = vmatpush.bf16.msra.mxu0 %v252
    %1016 = vmatmul.bf16.gmra.mxu0 %v1006
    %v1017 = vpop.f32.mrf.mxu0
    %v1018 = vadd.f32 0.0, %v1017
    %v1019 = vpop.f32.mrf.mxu0
    %v1020 = vadd.f32 0.0, %v1019
    %1021 = vdwg.mxu0
    %v1022 = vadd.f32 %v999, %v1018
    %v1023 = vadd.f32 %v1000, %v1020
    %v1024 = vxor.u32 %v1022, 2147483648
    %v1025 = vxor.u32 %v1023, 2147483648
    %v1026 = vmul.f32 %v1024, 1.442695
    %v1027 = vpow.pop %v1026
    %v1028 = vmul.f32 %v1025, 1.442695
    %v1029 = vpow.pop %v1028
    %v1030 = vadd.f32 %v1027, 1.0
    %v1031 = vadd.f32 %v1029, 1.0
    %v1032 = vrcp.pop %v1030
    %v1033 = vmul.f32 %v1030, %v1032
    %v1034 = vsub.f32 1.0, %v1033
    %v1035 = vmul.f32 %v1032, %v1034
    %v1036 = vadd.f32 %v1032, %v1035
    %vm1037 = vweird.f32 %v1030
    %vm1038 = vweird.f32 %v1032
    %vm1039 = vmor %vm1037, %vm1038
    %v1040 = vsel %vm1039, %v1032, %v1036
    %v1041 = vand.u32 2147483647, %v1030
    %vm1042 = vcmp.eq.f32.partialorder %v1041, 8.507059e+37
    %v1043 = vand.u32 %v1030, 2147483648
    %v1044 = vor.u32 1.1754944e-38, %v1043
    %v1045 = vsel %vm1042, %v1044, %v1040
    %v1046 = vmul.f32 1.0, %v1045
    %v1047 = vrcp.pop %v1031
    %v1048 = vmul.f32 %v1031, %v1047
    %v1049 = vsub.f32 1.0, %v1048
    %v1050 = vmul.f32 %v1047, %v1049
    %v1051 = vadd.f32 %v1047, %v1050
    %vm1052 = vweird.f32 %v1031
    %vm1053 = vweird.f32 %v1047
    %vm1054 = vmor %vm1052, %vm1053
    %v1055 = vsel %vm1054, %v1047, %v1051
    %v1056 = vand.u32 2147483647, %v1031
    %vm1057 = vcmp.eq.f32.partialorder %v1056, 8.507059e+37
    %v1058 = vand.u32 %v1031, 2147483648
    %v1059 = vor.u32 1.1754944e-38, %v1058
    %v1060 = vsel %vm1057, %v1059, %v1055
    %v1061 = vmul.f32 1.0, %v1060
    %v1062 = vtanh.pop %v1022
    %v1063 = vtanh.pop %v1023
    %v1064 = vmul.f32 %v1046, %v992
    %v1065 = vmul.f32 %v1061, %v993
    %1068 = vrot.lane.b32.xlu0 %v1062, 64
    %v1069 = vpop.permute.xlu0 %1068
    %1070 = vrot.lane.b32.xlu0 %v1063, 64
    %v1071 = vpop.permute.xlu0 %1070
    %v1074 = vmul.f32 %v1046, %v1069
    %v1075 = vmul.f32 %v1061, %v1071
    %1078 = vrot.lane.b32.xlu0 %v1074, 32
    %v1079 = vpop.permute.xlu0 %1078
    %1080 = vrot.lane.b32.xlu0 %v1075, 32
    %v1081 = vpop.permute.xlu0 %1080
    %v1084 = vadd.f32 %v1064, %v1079
    %v1085 = vadd.f32 %v1065, %v1081
    %v1086 = vtanh.pop %v1084
    %v1087 = vtanh.pop %v1085
    %1090 = vrot.lane.b32.xlu0 %v1086, 64
    %v1091 = vpop.permute.xlu0 %1090
    %1092 = vrot.lane.b32.xlu0 %v1087, 64
    %v1093 = vpop.permute.xlu0 %1092
    %v1096 = vmul.f32 %v1046, %v1091
    %v1097 = vmul.f32 %v1061, %v1093
    %s1098 = sadd.s32 %s358, 6
    %v1099 = vstv %s1098
    %vm1100 = vcmp.lt.s32.totalorder %v1099, %v228
    %vm1101 = vcmp.lt.s32.totalorder %v1099, %v229
    %v1102 = vsel %vm1100, 1, 0
    %v1103 = vsel %vm1101, 1, 0
    %1104 = vset.pattern.permute.xlu0 0
    %1105 = vperm.xlu0 %1104, %v1102
    %v1106 = vpop.permute.xlu0 %1105
    %1107 = vset.pattern.permute.xlu0 0
    %1108 = vperm.xlu0 %1107, %v1103
    %v1109 = vpop.permute.xlu0 %1108
    %vm1110 = vcmp.eq.s32.totalorder %v1106, 1
    %vm1111 = vcmp.eq.s32.totalorder %v1109, 1
    %v1112 = vsel %vm1110, %v1096, %v990
    %v1113 = vsel %vm1111, %v1097, %v991
    %v1114 = vsel %vm1110, %v1084, %v992
    %v1115 = vsel %vm1111, %v1085, %v993
    %s1116 = scalar_lea.vmem [#allocation4], 56
    %v1117 = vld [vmem:[%s1116] sm:$0xf]
    %v1118 = vld [vmem:[%s1116 + $0x4] sm:$0xf]
    %v1119 = vunpack.c.l.bf16 %v1117
    %v1120 = vunpack.c.l.bf16 %v1118
    %v1121 = vadd.f32 %v1119, %v239
    %v1122 = vadd.f32 %v1120, %v239
    %v1123 = vpack.c.bf16 %v1113, %v1112
    %1125 = vrot.lane.b32.xlu0 %v1123, 32
    %v1126 = vpop.permute.xlu0 %1125
    %v1128 = vsel %vm256, %v1126, 0
    %1130 = vmatpush.bf16.msra.mxu0 0
    %1131 = vmatpush.bf16.msra.mxu0 0
    %1132 = vmatpush.bf16.msra.mxu0 0
    %1133 = vmatpush.bf16.msra.mxu0 0
    %1134 = vmatpush.bf16.msra.mxu0 0
    %1135 = vmatpush.bf16.msra.mxu0 0
    %1136 = vmatpush.bf16.msra.mxu0 %v253
    %1137 = vmatpush.bf16.msra.mxu0 %v252
    %1138 = vmatmul.bf16.gmra.mxu0 %v1128
    %v1139 = vpop.f32.mrf.mxu0
    %v1140 = vadd.f32 0.0, %v1139
    %v1141 = vpop.f32.mrf.mxu0
    %v1142 = vadd.f32 0.0, %v1141
    %1143 = vdwg.mxu0
    %v1144 = vadd.f32 %v1121, %v1140
    %v1145 = vadd.f32 %v1122, %v1142
    %v1146 = vxor.u32 %v1144, 2147483648
    %v1147 = vxor.u32 %v1145, 2147483648
    %v1148 = vmul.f32 %v1146, 1.442695
    %v1149 = vpow.pop %v1148
    %v1150 = vmul.f32 %v1147, 1.442695
    %v1151 = vpow.pop %v1150
    %v1152 = vadd.f32 %v1149, 1.0
    %v1153 = vadd.f32 %v1151, 1.0
    %v1154 = vrcp.pop %v1152
    %v1155 = vmul.f32 %v1152, %v1154
    %v1156 = vsub.f32 1.0, %v1155
    %v1157 = vmul.f32 %v1154, %v1156
    %v1158 = vadd.f32 %v1154, %v1157
    %vm1159 = vweird.f32 %v1152
    %vm1160 = vweird.f32 %v1154
    %vm1161 = vmor %vm1159, %vm1160
    %v1162 = vsel %vm1161, %v1154, %v1158
    %v1163 = vand.u32 2147483647, %v1152
    %vm1164 = vcmp.eq.f32.partialorder %v1163, 8.507059e+37
    %v1165 = vand.u32 %v1152, 2147483648
    %v1166 = vor.u32 1.1754944e-38, %v1165
    %v1167 = vsel %vm1164, %v1166, %v1162
    %v1168 = vmul.f32 1.0, %v1167
    %v1169 = vrcp.pop %v1153
    %v1170 = vmul.f32 %v1153, %v1169
    %v1171 = vsub.f32 1.0, %v1170
    %v1172 = vmul.f32 %v1169, %v1171
    %v1173 = vadd.f32 %v1169, %v1172
    %vm1174 = vweird.f32 %v1153
    %vm1175 = vweird.f32 %v1169
    %vm1176 = vmor %vm1174, %vm1175
    %v1177 = vsel %vm1176, %v1169, %v1173
    %v1178 = vand.u32 2147483647, %v1153
    %vm1179 = vcmp.eq.f32.partialorder %v1178, 8.507059e+37
    %v1180 = vand.u32 %v1153, 2147483648
    %v1181 = vor.u32 1.1754944e-38, %v1180
    %v1182 = vsel %vm1179, %v1181, %v1177
    %v1183 = vmul.f32 1.0, %v1182
    %v1184 = vtanh.pop %v1144
    %v1185 = vtanh.pop %v1145
    %v1186 = vmul.f32 %v1168, %v1114
    %v1187 = vmul.f32 %v1183, %v1115
    %1190 = vrot.lane.b32.xlu0 %v1184, 64
    %v1191 = vpop.permute.xlu0 %1190
    %1192 = vrot.lane.b32.xlu0 %v1185, 64
    %v1193 = vpop.permute.xlu0 %1192
    %v1196 = vmul.f32 %v1168, %v1191
    %v1197 = vmul.f32 %v1183, %v1193
    %1200 = vrot.lane.b32.xlu0 %v1196, 32
    %v1201 = vpop.permute.xlu0 %1200
    %1202 = vrot.lane.b32.xlu0 %v1197, 32
    %v1203 = vpop.permute.xlu0 %1202
    %v1206 = vadd.f32 %v1186, %v1201
    %v1207 = vadd.f32 %v1187, %v1203
    %v1208 = vtanh.pop %v1206
    %v1209 = vtanh.pop %v1207
    %1212 = vrot.lane.b32.xlu0 %v1208, 64
    %v1213 = vpop.permute.xlu0 %1212
    %1214 = vrot.lane.b32.xlu0 %v1209, 64
    %v1215 = vpop.permute.xlu0 %1214
    %v1218 = vmul.f32 %v1168, %v1213
    %v1219 = vmul.f32 %v1183, %v1215
    %s1220 = sadd.s32 %s358, 7
    %v1221 = vstv %s1220
    %vm1222 = vcmp.lt.s32.totalorder %v1221, %v228
    %vm1223 = vcmp.lt.s32.totalorder %v1221, %v229
    %v1224 = vsel %vm1222, 1, 0
    %v1225 = vsel %vm1223, 1, 0
    %1226 = vset.pattern.permute.xlu0 0
    %1227 = vperm.xlu0 %1226, %v1224
    %v1228 = vpop.permute.xlu0 %1227
    %1229 = vset.pattern.permute.xlu0 0
    %1230 = vperm.xlu0 %1229, %v1225
    %v1231 = vpop.permute.xlu0 %1230
    %vm1232 = vcmp.eq.s32.totalorder %v1228, 1
    %vm1233 = vcmp.eq.s32.totalorder %v1231, 1
    %v1234 = vsel %vm1232, %v1218, %v1112
    %v1235 = vsel %vm1233, %v1219, %v1113
    %v1236 = vsel %vm1232, %v1206, %v1114
    %v1237 = vsel %vm1233, %v1207, %v1115
    %1240 = vrot.lane.b32.xlu0 %v1234, 32
    %v1241 = vpop.permute.xlu0 %1240
    %1242 = vrot.lane.b32.xlu0 %v1235, 32
    %v1243 = vpop.permute.xlu0 %1242
    %1246 = vst.msk [vmem:[#allocation2] sm:$0xff] %vm256, %v1241
    %1247 = vst.msk [vmem:[#allocation2 + $0x8] sm:$0xff] %vm256, %v1243
    %1250 = vrot.lane.b32.xlu0 %v1236, 96
    %v1251 = vpop.permute.xlu0 %1250
    %1252 = vrot.lane.b32.xlu0 %v1237, 96
    %v1253 = vpop.permute.xlu0 %1252
    %1256 = vst.msk [vmem:[#allocation3] sm:$0xff] %vm256, %v1251
    %1257 = vst.msk [vmem:[#allocation3 + $0x8] sm:$0xff] %vm256, %v1253
    // Predicated region
    $region38: #{tpu_custom_call.1} parent=1 // pred_check
      %p1258 = pneg %p44
    $region39: #{tpu_custom_call.1} parent=1 // pred_check_branch
      %1260 = sbr.rel (%p1258) target = $region41
    $region40: #{tpu_custom_call.1} parent=1 // pred_region
      %v1261 = vpack.c.bf16 %v1235, %v1234
      %v1262 = vld [vmem:[%s5] sm:$0xf]
      %v1263 = vld [vmem:[%s5 + $0x4] sm:$0xf]
      %v1264 = vld [vmem:[%s5 + $0x8] sm:$0xf]
      %v1265 = vld [vmem:[%s5 + $0xc] sm:$0xf]
      %v1266 = vpack.c.bf16 %v1237, %v1236
      %v1267 = vld [vmem:[%s5 + $0x10] sm:$0xf]
      %v1268 = vld [vmem:[%s5 + $0x14] sm:$0xf]
      %v1269 = vld [vmem:[%s5 + $0x18] sm:$0xf]
      %v1270 = vld [vmem:[%s5 + $0x1c] sm:$0xf]
      %1272 = vrot.lane.b32.xlu0 %v1266, 96
      %v1273 = vpop.permute.xlu0 %1272
      %v1278 = vunpack.c.l.b16 %v1267
      %v1279 = vunpack.c.l.b16 %v1268
      %v1280 = vunpack.c.l.b16 %v1269
      %v1281 = vunpack.c.l.b16 %v1270
      %v1282 = vpack.c.b16 %v1279, %v1278
      %v1283 = vpack.c.b16 %v1281, %v1280
      %v1287 = vsel %vm256, %v1273, 0
      %1289 = vmatpush.bf16.msra.mxu0 0
      %1290 = vmatpush.bf16.msra.mxu0 0
      %1291 = vmatpush.bf16.msra.mxu0 0
      %1292 = vmatpush.bf16.msra.mxu0 0
      %1293 = vmatpush.bf16.msra.mxu0 0
      %1294 = vmatpush.bf16.msra.mxu0 0
      %1295 = vmatpush.bf16.msra.mxu0 %v1283
      %1296 = vmatpush.bf16.msra.mxu0 %v1282
      %1297 = vmatmul.bf16.gmra.mxu0 %v1287
      %v1298 = vpop.f32.mrf.mxu0
      %v1299 = vadd.f32 0.0, %v1298
      %v1300 = vpop.f32.mrf.mxu0
      %v1301 = vadd.f32 0.0, %v1300
      %1302 = vdwg.mxu0
      %1304 = vrot.lane.b32.xlu0 %v1261, 32
      %v1305 = vpop.permute.xlu0 %1304
      %v1310 = vunpack.c.l.b16 %v1262
      %v1311 = vunpack.c.l.b16 %v1263
      %v1312 = vunpack.c.l.b16 %v1264
      %v1313 = vunpack.c.l.b16 %v1265
      %v1314 = vpack.c.b16 %v1311, %v1310
      %v1315 = vpack.c.b16 %v1313, %v1312
      %v1319 = vsel %vm256, %v1305, 0
      %1321 = vmatpush.bf16.msra.mxu0 0
      %1322 = vmatpush.bf16.msra.mxu0 0
      %1323 = vmatpush.bf16.msra.mxu0 0
      %1324 = vmatpush.bf16.msra.mxu0 0
      %1325 = vmatpush.bf16.msra.mxu0 0
      %1326 = vmatpush.bf16.msra.mxu0 0
      %1327 = vmatpush.bf16.msra.mxu0 %v1315
      %1328 = vmatpush.bf16.msra.mxu0 %v1314
      %1329 = vmatmul.bf16.gmra.mxu0 %v1319
      %v1330 = vpop.f32.mrf.mxu0
      %v1331 = vadd.f32 %v1299, %v1330
      %v1332 = vpop.f32.mrf.mxu0
      %v1333 = vadd.f32 %v1301, %v1332
      %1334 = vdwg.mxu0
      %v1335 = vld [vmem:[%s6] sm:$0x1]
      %v1337 = vperm.slane %v1335, 0
      %v1339 = vadd.f32 %v1331, %v1337
      %v1340 = vadd.f32 %v1333, %v1337
      %1341 = vst.msk [vmem:[#allocation8] sm:$0xff] %vm117, %v1339
      %1342 = vst.msk [vmem:[#allocation8 + $0x8] sm:$0xff] %vm117, %v1340
    $region41: #{tpu_custom_call.1} parent=1 // pred_fallthru
      _
    // Predicated region
    $region42: #{tpu_custom_call.1} parent=1 // pred_check
      _
    $region43: #{tpu_custom_call.1} parent=1 // pred_check_branch
      %1344 = sbr.rel (0) target = $region45
    $region44: #{tpu_custom_call.1} parent=1 // pred_region
      %1346 = vsyncadd [#allocation7], 0
      %s1347 = sshll.u32 [#allocation8], 4
      %s1348 = int_to_ptr.vmem [resolvable:$true] %s1347
      %s1349 = sshll.u32 %s7, 4
      %s1350 = int_to_ptr.hbm [resolvable:$true] %s1349
      %1355 = dma.vmem_to_hbm [thread:$0]  %s1348, 256, %s1350, [#allocation7], 128, 128, 8
    $region45: #{tpu_custom_call.1} parent=1 // pred_fallthru
      _
    // Predicated region
    $region46: #{tpu_custom_call.1} parent=1 // pred_check
      _
    $region47: #{tpu_custom_call.1} parent=1 // pred_check_branch
      %1357 = sbr.rel (0) target = $region49
    $region48: #{tpu_custom_call.1} parent=1 // pred_region
      %1359 = dma.done [#allocation7], 256
    $region49: #{tpu_custom_call.1} parent=1 // pred_fallthru
      _
    %1360 = vsyncpa [#allocation6], 1
    %1361 = vsyncpa [#allocation7], 1

</llo_original>
